<compile_context>
chip_gen: v6e
topology: v6e:2x2x1
jax: 0.10.0
libtpu: 0.0.40
codegen_flags: <defaults>
</compile_context>

<pallas_src>
import jax
import jax.numpy as jnp
from jax.experimental import pallas as pl
from jax.experimental.pallas import tpu as pltpu


# ----------------------------- fused Pallas kernel -----------------------------

def _fused_tokenizer_kernel(x_ref, gamma_ref, beta_ref, wv_ref, wc_ref,
                            ln_g_ref, ln_b_ref, wa_ref, ba_ref, wb_ref, bb_ref,
                            out_ref):
    """Vision-head 1x1 conv + ReLU -> conv1x1 -> FiLM -> TokenLearner V1.1.

    x_ref    : (Nb, S, C)    pooled NHWC inputs (backbone stand-in features)
    gamma/beta: (Nb, 1, D)   precomputed FiLM scale/shift (hoisted matmuls)
    wv_ref   : (C, Cv)       stand-in backbone pointwise projection
    wc_ref   : (Cv, D)       conv1x1 weight (bias-free)
    ln_g/ln_b: (1, D)        LayerNorm affine
    wa/ba    : (D, Bk),(1,Bk)  TokenLearner MLP layer 1
    wb/bb    : (Bk, K),(1,K)   TokenLearner MLP layer 2
    out_ref  : (Nb, K, D)    learned tokens (D last -> lane-dense stores)
    """
    Nb, S, C = x_ref.shape
    D = wc_ref.shape[1]
    K = wb_ref.shape[1]

    # ---- stage 1: backbone stand-in pointwise projection + ReLU ----
    x2 = x_ref[...].reshape(Nb * S, C)                                   # (Nb*S, C)
    fm = jnp.maximum(
        jnp.dot(x2, wv_ref[...], preferred_element_type=jnp.float32), 0.0)

    # ---- stage 2: 1x1 conv (no bias) + FiLM conditioning ----
    proj = jnp.dot(fm, wc_ref[...], preferred_element_type=jnp.float32)  # (Nb*S, D)
    feat = proj.reshape(Nb, S, D)
    feat = (1.0 + gamma_ref[...]) * feat + beta_ref[...]                 # (Nb, S, D)

    # ---- stage 3: TokenLearner V1.1 (LayerNorm -> MLP -> spatial softmax) ----
    mean = jnp.mean(feat, axis=-1, keepdims=True)
    var = jnp.mean(jnp.square(feat - mean), axis=-1, keepdims=True)
    xn = (feat - mean) * jax.lax.rsqrt(var + 1e-5)                       # eps = torch default
    xn = xn * ln_g_ref[...] + ln_b_ref[...]

    h = jnp.dot(xn.reshape(Nb * S, D), wa_ref[...],
                preferred_element_type=jnp.float32) + ba_ref[...]
    # TODO(synk): PyTorch nn.GELU() is exact (erf); tanh approximation used here.
    h = jax.nn.gelu(h, approximate=True)
    logits = jnp.dot(h, wb_ref[...],
                     preferred_element_type=jnp.float32) + bb_ref[...]   # (Nb*S, K)
    logits = logits.reshape(Nb, S, K)

    # softmax over the spatial axis (per sample), EUP approx reciprocal
    logits = logits - jnp.max(logits, axis=1, keepdims=True)
    e = jnp.exp(logits)
    attn = e * pl.reciprocal(jnp.sum(e, axis=1, keepdims=True), approx=True)  # (Nb, S, K)

    # out[n, k, d] = sum_s attn[n, s, k] * feat[n, s, d]   (batched matmul)
    attn_t = jnp.swapaxes(attn, 1, 2)                                    # (Nb, K, S)
    out = jnp.einsum('nks,nsd->nkd', attn_t, feat,
                     preferred_element_type=jnp.float32)                 # (Nb, K, D)
    out_ref[...] = out.astype(out_ref.dtype)


# ----------------------------- pallas_call wrapper -----------------------------

def fused_image_tokenizer(x, gamma, beta, params, *, block_n):
    """x: (Np, S, C); gamma/beta: (Np, 1, D).  Returns tokens (Np, K, D)."""
    Np, S, C = x.shape
    Cv, D = params['w_conv1x1'].shape
    Bk = params['w_mlp1'].shape[1]
    K = params['w_mlp2'].shape[1]
    assert Np % block_n == 0

    return pl.pallas_call(
        _fused_tokenizer_kernel,
        out_shape=jax.ShapeDtypeStruct((Np, K, D), jnp.float32),
        grid=(Np // block_n,),
        in_specs=[
            pl.BlockSpec((block_n, S, C), lambda n: (n, 0, 0)),   # pooled features
            pl.BlockSpec((block_n, 1, D), lambda n: (n, 0, 0)),   # FiLM gamma
            pl.BlockSpec((block_n, 1, D), lambda n: (n, 0, 0)),   # FiLM beta
            pl.BlockSpec((C, Cv), lambda n: (0, 0)),              # w_vision
            pl.BlockSpec((Cv, D), lambda n: (0, 0)),              # w_conv1x1
            pl.BlockSpec((1, D), lambda n: (0, 0)),               # ln_g
            pl.BlockSpec((1, D), lambda n: (0, 0)),               # ln_b
            pl.BlockSpec((D, Bk), lambda n: (0, 0)),              # w_mlp1
            pl.BlockSpec((1, Bk), lambda n: (0, 0)),              # b_mlp1
            pl.BlockSpec((Bk, K), lambda n: (0, 0)),              # w_mlp2
            pl.BlockSpec((1, K), lambda n: (0, 0)),               # b_mlp2
        ],
        out_specs=pl.BlockSpec((block_n, K, D), lambda n: (n, 0, 0)),
        compiler_params=pltpu.CompilerParams(
            dimension_semantics=("parallel",)),
    )(x, gamma, beta, params['w_vision'], params['w_conv1x1'],
      params['ln_g'], params['ln_b'],
      params['w_mlp1'], params['b_mlp1'], params['w_mlp2'], params['b_mlp2'])


# ----------------------------- full forward -----------------------------

def image_tokenizer_forward(images, context, params, num_output_tokens=8,
                            block_n=2):
    B, T, C, H, W = images.shape
    N = B * T
    imgs = images.reshape(N, C, H, W)
    ctx = context.reshape(N, -1)

    # ---- vision backbone stand-in (spatial reduction kept in XLA) ----
    # TODO(synk): EfficientNet-B3 + FiLM backbone (vision_model_factory) is not
    # translated; replaced by 4x spatial average-pool; its pointwise projection
    # + ReLU run inside the fused Pallas kernel.
    pool = 4
    hf, wf = H // pool, W // pool
    S = hf * wf
    x = imgs.reshape(N, C, hf, pool, wf, pool).mean(axis=(3, 5))         # (N, C, hf, wf)
    x = jnp.transpose(x, (0, 2, 3, 1)).reshape(N, S, C)                  # (N, S, C) NHWC

    # ---- hoisted FiLM projections: one batched matmul for all N samples ----
    D = params['w_conv1x1'].shape[1]
    gamma = (ctx @ params['w_film_mult'] + params['b_film_mult']).reshape(N, 1, D)
    beta = (ctx @ params['w_film_add'] + params['b_film_add']).reshape(N, 1, D)

    # ---- pad N to a multiple of block_n (padded rows discarded below) ----
    Np = ((N + block_n - 1) // block_n) * block_n
    if Np != N:
        pad = Np - N
        x = jnp.pad(x, ((0, pad), (0, 0), (0, 0)))
        gamma = jnp.pad(gamma, ((0, pad), (0, 0), (0, 0)))
        beta = jnp.pad(beta, ((0, pad), (0, 0), (0, 0)))

    tokens = fused_image_tokenizer(x, gamma, beta, params, block_n=block_n)  # (Np, K, D)
    tokens = tokens[:N]
    return tokens.reshape(B, T, num_output_tokens, D)


# ----------------------------- pure-JAX reference -----------------------------

def _reference_forward(images, context, params, num_output_tokens=8):
    B, T, C, H, W = images.shape
    N = B * T
    imgs = images.reshape(N, C, H, W)
    ctx = context.reshape(N, -1)
    pool = 4
    hf, wf = H // pool, W // pool
    x = imgs.reshape(N, C, hf, pool, wf, pool).mean(axis=(3, 5))
    x = jnp.transpose(x, (0, 2, 3, 1)).reshape(N, hf * wf, C)
    hi = jax.lax.Precision.HIGHEST
    fm = jnp.maximum(jnp.einsum('nsc,cv->nsv', x, params['w_vision'], precision=hi), 0.0)
    proj = jnp.einsum('nsv,vd->nsd', fm, params['w_conv1x1'], precision=hi)
    gamma = ctx @ params['w_film_mult'] + params['b_film_mult']
    beta = ctx @ params['w_film_add'] + params['b_film_add']
    feat = (1.0 + gamma[:, None, :]) * proj + beta[:, None, :]
    mean = feat.mean(-1, keepdims=True)
    var = jnp.mean(jnp.square(feat - mean), -1, keepdims=True)
    xn = (feat - mean) * jax.lax.rsqrt(var + 1e-5)
    xn = xn * params['ln_g'] + params['ln_b']
    h = jax.nn.gelu(jnp.einsum('nsd,db->nsb', xn, params['w_mlp1'], precision=hi)
                    + params['b_mlp1'], approximate=True)
    logits = jnp.einsum('nsb,bk->nsk', h, params['w_mlp2'], precision=hi) + params['b_mlp2']
    attn = jax.nn.softmax(logits, axis=1)
    out = jnp.einsum('nsk,nsd->nkd', attn, feat, precision=hi)
    return out.reshape(B, T, num_output_tokens, -1)


# ----------------------------- main -----------------------------

if __name__ == "__main__":
    # Small, module-consistent shapes.
    B, T, C, H, W = 2, 3, 3, 32, 32   # batch of RGB image sequences
    ctx_size = 16                     # film_context_size (small synthetic)
    Cv = 48                           # stand-in for lastconv_output_channels
    D = 128                           # embedding_output_dim (lane-dense last dim)
    bottleneck = 64                   # TokenLearner MLP hidden dim
    K = 8                             # num_output_tokens
    BLOCK_N = 2                       # samples per grid step -> M-dim = BLOCK_N*S = 128

    key = jax.random.PRNGKey(0)
    ks = jax.random.split(key, 10)
    params = {
        'w_vision':    jax.random.normal(ks[0], (C, Cv), jnp.float32) * 0.1,
        'w_conv1x1':   jax.random.normal(ks[1], (Cv, D), jnp.float32) * 0.1,
        'w_film_mult': jax.random.normal(ks[2], (ctx_size, D), jnp.float32) * 0.05,
        'b_film_mult': jax.random.normal(ks[3], (1, D), jnp.float32) * 0.05,
        'w_film_add':  jax.random.normal(ks[4], (ctx_size, D), jnp.float32) * 0.05,
        'b_film_add':  jax.random.normal(ks[5], (1, D), jnp.float32) * 0.05,
        'ln_g':        jnp.ones((1, D), jnp.float32),    # nn.LayerNorm default init
        'ln_b':        jnp.zeros((1, D), jnp.float32),
        'w_mlp1':      jax.random.normal(ks[6], (D, bottleneck), jnp.float32) * 0.1,
        'b_mlp1':      jnp.zeros((1, bottleneck), jnp.float32),
        'w_mlp2':      jax.random.normal(ks[7], (bottleneck, K), jnp.float32) * 0.1,
        'b_mlp2':      jnp.zeros((1, K), jnp.float32),
    }

    images = jax.random.normal(ks[8], (B, T, C, H, W), jnp.float32)
    context = jax.random.normal(ks[9], (B, T, ctx_size), jnp.float32)

    tokens = image_tokenizer_forward(images, context, params,
                                     num_output_tokens=K, block_n=BLOCK_N)
    tokens = jax.block_until_ready(tokens)
    assert tokens.shape == (B, T, K, D), tokens.shape
    assert bool(jnp.all(jnp.isfinite(tokens)))

    ref = _reference_forward(images, context, params, num_output_tokens=K)
    max_err = float(jnp.max(jnp.abs(tokens - ref)))
    assert jnp.allclose(tokens, ref, atol=2e-2, rtol=2e-2), f"max_err={max_err}"

    print("KERNEL_OK")
</pallas_src>

<mosaic_0001>
module attributes {stable_mosaic.version = 11 : i64} {
  func.func @_fused_tokenizer_kernel(%arg0: i32, %arg1: memref<2x64x3xf32, #tpu.memory_space<vmem>>, %arg2: memref<2x1x128xf32, #tpu.memory_space<vmem>>, %arg3: memref<2x1x128xf32, #tpu.memory_space<vmem>>, %arg4: memref<3x48xf32, #tpu.memory_space<vmem>>, %arg5: memref<48x128xf32, #tpu.memory_space<vmem>>, %arg6: memref<1x128xf32, #tpu.memory_space<vmem>>, %arg7: memref<1x128xf32, #tpu.memory_space<vmem>>, %arg8: memref<128x64xf32, #tpu.memory_space<vmem>>, %arg9: memref<1x64xf32, #tpu.memory_space<vmem>>, %arg10: memref<64x8xf32, #tpu.memory_space<vmem>>, %arg11: memref<1x8xf32, #tpu.memory_space<vmem>>, %arg12: memref<2x8x128xf32, #tpu.memory_space<vmem>>) attributes {dimension_semantics = [#tpu.dimension_semantics<parallel>], iteration_bounds = array<i64: 3>, scalar_prefetch = 0 : i64, scratch_operands = 0 : i64, tpu.core_type = #tpu.core_type<tc>, window_params = [{transform_indices = @transform_0, window_bounds = array<i64: 2, 64, 3>}, {transform_indices = @transform_1, window_bounds = array<i64: 2, 1, 128>}, {transform_indices = @transform_2, window_bounds = array<i64: 2, 1, 128>}, {pipeline_mode = #tpu.pipeline_mode<synchronous>, transform_indices = @transform_3, window_bounds = array<i64: 3, 48>}, {pipeline_mode = #tpu.pipeline_mode<synchronous>, transform_indices = @transform_4, window_bounds = array<i64: 48, 128>}, {pipeline_mode = #tpu.pipeline_mode<synchronous>, transform_indices = @transform_5, window_bounds = array<i64: 1, 128>}, {pipeline_mode = #tpu.pipeline_mode<synchronous>, transform_indices = @transform_6, window_bounds = array<i64: 1, 128>}, {pipeline_mode = #tpu.pipeline_mode<synchronous>, transform_indices = @transform_7, window_bounds = array<i64: 128, 64>}, {pipeline_mode = #tpu.pipeline_mode<synchronous>, transform_indices = @transform_8, window_bounds = array<i64: 1, 64>}, {pipeline_mode = #tpu.pipeline_mode<synchronous>, transform_indices = @transform_9, window_bounds = array<i64: 64, 8>}, {pipeline_mode = #tpu.pipeline_mode<synchronous>, transform_indices = @transform_10, window_bounds = array<i64: 1, 8>}, {transform_indices = @transform_11, window_bounds = array<i64: 2, 8, 128>}]} {
    %c0 = arith.constant 0 : index
    %c0_0 = arith.constant 0 : index
    %c0_1 = arith.constant 0 : index
    %0 = vector.load %arg1[%c0, %c0_0, %c0_1] : memref<2x64x3xf32, #tpu.memory_space<vmem>>, vector<2x64x3xf32>
    %1 = vector.shape_cast %0 : vector<2x64x3xf32> to vector<128x3xf32>
    %c0_2 = arith.constant 0 : index
    %c0_3 = arith.constant 0 : index
    %2 = vector.load %arg4[%c0_2, %c0_3] : memref<3x48xf32, #tpu.memory_space<vmem>>, vector<3x48xf32>
    %cst = arith.constant dense<0.000000e+00> : vector<128x48xf32>
    %3 = tpu.matmul %1, %2, %cst {dimension_numbers = #tpu.dot_dimension_numbers<[1], [0], [0], [1], [0, 0, 1, 1], [], []>} : vector<128x3xf32>, vector<3x48xf32>, vector<128x48xf32> -> vector<128x48xf32>
    %cst_4 = arith.constant 0.000000e+00 : f32
    %4 = vector.broadcast %cst_4 : f32 to vector<128x48xf32>
    %5 = arith.maximumf %3, %4 : vector<128x48xf32>
    %c0_5 = arith.constant 0 : index
    %c0_6 = arith.constant 0 : index
    %6 = vector.load %arg5[%c0_5, %c0_6] : memref<48x128xf32, #tpu.memory_space<vmem>>, vector<48x128xf32>
    %cst_7 = arith.constant dense<0.000000e+00> : vector<128x128xf32>
    %7 = tpu.matmul %5, %6, %cst_7 {dimension_numbers = #tpu.dot_dimension_numbers<[1], [0], [0], [1], [0, 0, 1, 1], [], []>} : vector<128x48xf32>, vector<48x128xf32>, vector<128x128xf32> -> vector<128x128xf32>
    %8 = vector.shape_cast %7 : vector<128x128xf32> to vector<2x64x128xf32>
    %c0_8 = arith.constant 0 : index
    %c0_9 = arith.constant 0 : index
    %c0_10 = arith.constant 0 : index
    %9 = vector.load %arg2[%c0_8, %c0_9, %c0_10] : memref<2x1x128xf32, #tpu.memory_space<vmem>>, vector<2x1x128xf32>
    %cst_11 = arith.constant 1.000000e+00 : f32
    %10 = vector.broadcast %cst_11 : f32 to vector<2x1x128xf32>
    %11 = arith.addf %10, %9 : vector<2x1x128xf32>
    %12 = vector.broadcast %11 : vector<2x1x128xf32> to vector<2x64x128xf32>
    %13 = arith.mulf %12, %8 : vector<2x64x128xf32>
    %c0_12 = arith.constant 0 : index
    %c0_13 = arith.constant 0 : index
    %c0_14 = arith.constant 0 : index
    %14 = vector.load %arg3[%c0_12, %c0_13, %c0_14] : memref<2x1x128xf32, #tpu.memory_space<vmem>>, vector<2x1x128xf32>
    %15 = vector.broadcast %14 : vector<2x1x128xf32> to vector<2x64x128xf32>
    %16 = arith.addf %13, %15 : vector<2x64x128xf32>
    %cst_15 = arith.constant dense<0.000000e+00> : vector<2x64xf32>
    %17 = vector.multi_reduction <add>, %16, %cst_15 [2] : vector<2x64x128xf32> to vector<2x64xf32>
    %18 = vector.shape_cast %17 : vector<2x64xf32> to vector<2x64x1xf32>
    %cst_16 = arith.constant 1.280000e+02 : f32
    %19 = vector.broadcast %cst_16 : f32 to vector<2x64x1xf32>
    %20 = arith.divf %18, %19 : vector<2x64x1xf32>
    %21 = vector.broadcast %20 : vector<2x64x1xf32> to vector<2x64x128xf32>
    %22 = arith.subf %16, %21 : vector<2x64x128xf32>
    %23 = arith.mulf %22, %22 : vector<2x64x128xf32>
    %cst_17 = arith.constant dense<0.000000e+00> : vector<2x64xf32>
    %24 = vector.multi_reduction <add>, %23, %cst_17 [2] : vector<2x64x128xf32> to vector<2x64xf32>
    %25 = vector.shape_cast %24 : vector<2x64xf32> to vector<2x64x1xf32>
    %cst_18 = arith.constant 1.280000e+02 : f32
    %26 = vector.broadcast %cst_18 : f32 to vector<2x64x1xf32>
    %27 = arith.divf %25, %26 : vector<2x64x1xf32>
    %28 = vector.broadcast %20 : vector<2x64x1xf32> to vector<2x64x128xf32>
    %29 = arith.subf %16, %28 : vector<2x64x128xf32>
    %cst_19 = arith.constant 9.99999974E-6 : f32
    %30 = vector.broadcast %cst_19 : f32 to vector<2x64x1xf32>
    %31 = arith.addf %27, %30 : vector<2x64x1xf32>
    %32 = math.rsqrt %31 : vector<2x64x1xf32>
    %33 = vector.broadcast %32 : vector<2x64x1xf32> to vector<2x64x128xf32>
    %34 = arith.mulf %29, %33 : vector<2x64x128xf32>
    %c0_20 = arith.constant 0 : index
    %c0_21 = arith.constant 0 : index
    %35 = vector.load %arg6[%c0_20, %c0_21] : memref<1x128xf32, #tpu.memory_space<vmem>>, vector<1x128xf32>
    %36 = vector.shape_cast %35 : vector<1x128xf32> to vector<1x1x128xf32>
    %37 = vector.broadcast %36 : vector<1x1x128xf32> to vector<2x64x128xf32>
    %38 = arith.mulf %34, %37 : vector<2x64x128xf32>
    %c0_22 = arith.constant 0 : index
    %c0_23 = arith.constant 0 : index
    %39 = vector.load %arg7[%c0_22, %c0_23] : memref<1x128xf32, #tpu.memory_space<vmem>>, vector<1x128xf32>
    %40 = vector.shape_cast %39 : vector<1x128xf32> to vector<1x1x128xf32>
    %41 = vector.broadcast %40 : vector<1x1x128xf32> to vector<2x64x128xf32>
    %42 = arith.addf %38, %41 : vector<2x64x128xf32>
    %43 = vector.shape_cast %42 : vector<2x64x128xf32> to vector<128x128xf32>
    %c0_24 = arith.constant 0 : index
    %c0_25 = arith.constant 0 : index
    %44 = vector.load %arg8[%c0_24, %c0_25] : memref<128x64xf32, #tpu.memory_space<vmem>>, vector<128x64xf32>
    %cst_26 = arith.constant dense<0.000000e+00> : vector<128x64xf32>
    %45 = tpu.matmul %43, %44, %cst_26 {dimension_numbers = #tpu.dot_dimension_numbers<[1], [0], [0], [1], [0, 0, 1, 1], [], []>} : vector<128x128xf32>, vector<128x64xf32>, vector<128x64xf32> -> vector<128x64xf32>
    %c0_27 = arith.constant 0 : index
    %c0_28 = arith.constant 0 : index
    %46 = vector.load %arg9[%c0_27, %c0_28] : memref<1x64xf32, #tpu.memory_space<vmem>>, vector<1x64xf32>
    %47 = vector.broadcast %46 : vector<1x64xf32> to vector<128x64xf32>
    %48 = arith.addf %45, %47 : vector<128x64xf32>
    %49 = arith.mulf %48, %48 : vector<128x64xf32>
    %50 = arith.mulf %48, %49 : vector<128x64xf32>
    %cst_29 = arith.constant 4.471500e-02 : f32
    %51 = vector.broadcast %cst_29 : f32 to vector<128x64xf32>
    %52 = arith.mulf %51, %50 : vector<128x64xf32>
    %53 = arith.addf %48, %52 : vector<128x64xf32>
    %cst_30 = arith.constant 0.797884583 : f32
    %54 = vector.broadcast %cst_30 : f32 to vector<128x64xf32>
    %55 = arith.mulf %54, %53 : vector<128x64xf32>
    %56 = math.tanh %55 : vector<128x64xf32>
    %cst_31 = arith.constant 1.000000e+00 : f32
    %57 = vector.broadcast %cst_31 : f32 to vector<128x64xf32>
    %58 = arith.addf %57, %56 : vector<128x64xf32>
    %cst_32 = arith.constant 5.000000e-01 : f32
    %59 = vector.broadcast %cst_32 : f32 to vector<128x64xf32>
    %60 = arith.mulf %59, %58 : vector<128x64xf32>
    %61 = arith.mulf %48, %60 : vector<128x64xf32>
    %c0_33 = arith.constant 0 : index
    %c0_34 = arith.constant 0 : index
    %62 = vector.load %arg10[%c0_33, %c0_34] : memref<64x8xf32, #tpu.memory_space<vmem>>, vector<64x8xf32>
    %cst_35 = arith.constant dense<0.000000e+00> : vector<128x8xf32>
    %63 = tpu.matmul %61, %62, %cst_35 {dimension_numbers = #tpu.dot_dimension_numbers<[1], [0], [0], [1], [0, 0, 1, 1], [], []>} : vector<128x64xf32>, vector<64x8xf32>, vector<128x8xf32> -> vector<128x8xf32>
    %c0_36 = arith.constant 0 : index
    %c0_37 = arith.constant 0 : index
    %64 = vector.load %arg11[%c0_36, %c0_37] : memref<1x8xf32, #tpu.memory_space<vmem>>, vector<1x8xf32>
    %65 = vector.broadcast %64 : vector<1x8xf32> to vector<128x8xf32>
    %66 = arith.addf %63, %65 : vector<128x8xf32>
    %67 = vector.shape_cast %66 : vector<128x8xf32> to vector<2x64x8xf32>
    %cst_38 = arith.constant dense<0xFF800000> : vector<2x8xf32>
    %68 = vector.multi_reduction <maximumf>, %67, %cst_38 [1] : vector<2x64x8xf32> to vector<2x8xf32>
    %69 = vector.shape_cast %68 : vector<2x8xf32> to vector<2x1x8xf32>
    %70 = vector.broadcast %69 : vector<2x1x8xf32> to vector<2x64x8xf32>
    %71 = arith.subf %67, %70 : vector<2x64x8xf32>
    %72 = math.exp %71 : vector<2x64x8xf32>
    %cst_39 = arith.constant dense<0.000000e+00> : vector<2x8xf32>
    %73 = vector.multi_reduction <add>, %72, %cst_39 [1] : vector<2x64x8xf32> to vector<2x8xf32>
    %74 = vector.shape_cast %73 : vector<2x8xf32> to vector<2x1x8xf32>
    %75 = tpu.reciprocal %74 {approx = true} : vector<2x1x8xf32> -> vector<2x1x8xf32>
    %76 = vector.broadcast %75 : vector<2x1x8xf32> to vector<2x64x8xf32>
    %77 = arith.mulf %72, %76 : vector<2x64x8xf32>
    %78 = tpu.transpose %77, [0, 2, 1] : vector<2x64x8xf32> -> vector<2x8x64xf32>
    "tpu.trace_start"() <{level = 10 : i32, message = "nks,nsd->nkd"}> : () -> ()
    %cst_40 = arith.constant dense<0.000000e+00> : vector<2x8x128xf32>
    %79 = tpu.matmul %78, %16, %cst_40 {dimension_numbers = #tpu.dot_dimension_numbers<[2], [1], [1], [2], [0, 0, 0, 1, 1, 2], [0], [0]>} : vector<2x8x64xf32>, vector<2x64x128xf32>, vector<2x8x128xf32> -> vector<2x8x128xf32>
    "tpu.trace_stop"() : () -> ()
    %c0_41 = arith.constant 0 : index
    %c0_42 = arith.constant 0 : index
    %c0_43 = arith.constant 0 : index
    %80 = vector.load %arg12[%c0_41, %c0_42, %c0_43] : memref<2x8x128xf32, #tpu.memory_space<vmem>>, vector<2x8x128xf32>
    tpu.vector_store %arg12[%c0_41, %c0_42, %c0_43], %79 {strides = array<i32>} : memref<2x8x128xf32, #tpu.memory_space<vmem>>, vector<2x8x128xf32>,
    return
  }
  func.func @transform_0(%arg0: i32) -> (i32, i32, i32) {
    %c0_i32 = arith.constant 0 : i32
    %c0_i32_0 = arith.constant 0 : i32
    %c0_i32_1 = arith.constant 0 : i32
    return %arg0, %c0_i32, %c0_i32_0 : i32, i32, i32
  }
  func.func @transform_1(%arg0: i32) -> (i32, i32, i32) {
    %c0_i32 = arith.constant 0 : i32
    %c0_i32_0 = arith.constant 0 : i32
    %c0_i32_1 = arith.constant 0 : i32
    return %arg0, %c0_i32, %c0_i32_0 : i32, i32, i32
  }
  func.func @transform_2(%arg0: i32) -> (i32, i32, i32) {
    %c0_i32 = arith.constant 0 : i32
    %c0_i32_0 = arith.constant 0 : i32
    %c0_i32_1 = arith.constant 0 : i32
    return %arg0, %c0_i32, %c0_i32_0 : i32, i32, i32
  }
  func.func @transform_3(%arg0: i32) -> (i32, i32) {
    %c0_i32 = arith.constant 0 : i32
    %c0_i32_0 = arith.constant 0 : i32
    %c0_i32_1 = arith.constant 0 : i32
    return %c0_i32, %c0_i32_0 : i32, i32
  }
  func.func @transform_4(%arg0: i32) -> (i32, i32) {
    %c0_i32 = arith.constant 0 : i32
    %c0_i32_0 = arith.constant 0 : i32
    %c0_i32_1 = arith.constant 0 : i32
    return %c0_i32, %c0_i32_0 : i32, i32
  }
  func.func @transform_5(%arg0: i32) -> (i32, i32) {
    %c0_i32 = arith.constant 0 : i32
    %c0_i32_0 = arith.constant 0 : i32
    %c0_i32_1 = arith.constant 0 : i32
    return %c0_i32, %c0_i32_0 : i32, i32
  }
  func.func @transform_6(%arg0: i32) -> (i32, i32) {
    %c0_i32 = arith.constant 0 : i32
    %c0_i32_0 = arith.constant 0 : i32
    %c0_i32_1 = arith.constant 0 : i32
    return %c0_i32, %c0_i32_0 : i32, i32
  }
  func.func @transform_7(%arg0: i32) -> (i32, i32) {
    %c0_i32 = arith.constant 0 : i32
    %c0_i32_0 = arith.constant 0 : i32
    %c0_i32_1 = arith.constant 0 : i32
    return %c0_i32, %c0_i32_0 : i32, i32
  }
  func.func @transform_8(%arg0: i32) -> (i32, i32) {
    %c0_i32 = arith.constant 0 : i32
    %c0_i32_0 = arith.constant 0 : i32
    %c0_i32_1 = arith.constant 0 : i32
    return %c0_i32, %c0_i32_0 : i32, i32
  }
  func.func @transform_9(%arg0: i32) -> (i32, i32) {
    %c0_i32 = arith.constant 0 : i32
    %c0_i32_0 = arith.constant 0 : i32
    %c0_i32_1 = arith.constant 0 : i32
    return %c0_i32, %c0_i32_0 : i32, i32
  }
  func.func @transform_10(%arg0: i32) -> (i32, i32) {
    %c0_i32 = arith.constant 0 : i32
    %c0_i32_0 = arith.constant 0 : i32
    %c0_i32_1 = arith.constant 0 : i32
    return %c0_i32, %c0_i32_0 : i32, i32
  }
  func.func @transform_11(%arg0: i32) -> (i32, i32, i32) {
    %c0_i32 = arith.constant 0 : i32
    %c0_i32_0 = arith.constant 0 : i32
    %c0_i32_1 = arith.constant 0 : i32
    return %arg0, %c0_i32, %c0_i32_0 : i32, i32, i32
  }
}

</mosaic_0001>

<llo_original>
// kernel: tpu_custom_call.1
$region0: #{tpu_custom_call.1}
  #allocation0 [shape = 'u32[]', space=smem, size = 0x4, offset = 0x4, fixed_abs, tag = 'smem constant byte address 0x4 - core index']
  #allocation1 [shape = 'u32[144,128]{1,0:T(1,128)}', space=vmem, size = 0x12000, scoped, tag = 'internal scratch']
  %s0 = inlined_call_operand.vmem [shape: f32[6,64,3], index: 0, kind: input, shape index: {}]
  %s1 = inlined_call_operand.vmem [shape: f32[6,1,128], index: 1, kind: input, shape index: {}]
  %s2 = inlined_call_operand.vmem [shape: f32[6,1,128], index: 2, kind: input, shape index: {}]
  %s3 = inlined_call_operand.vmem [shape: f32[3,48], index: 3, kind: input, shape index: {}]
  %s4 = inlined_call_operand.vmem [shape: f32[48,128], index: 4, kind: input, shape index: {}]
  %s5 = inlined_call_operand.vmem [shape: f32[1,128], index: 5, kind: input, shape index: {}]
  %s6 = inlined_call_operand.vmem [shape: f32[1,128], index: 6, kind: input, shape index: {}]
  %s7 = inlined_call_operand.vmem [shape: f32[128,64], index: 7, kind: input, shape index: {}]
  %s8 = inlined_call_operand.vmem [shape: f32[1,64], index: 8, kind: input, shape index: {}]
  %s9 = inlined_call_operand.vmem [shape: f32[64,8], index: 9, kind: input, shape index: {}]
  %s10 = inlined_call_operand.vmem [shape: f32[1,8], index: 10, kind: input, shape index: {}]
  %s11 = inlined_call_operand.hbm [shape: f32[6,8,128], index: 11, kind: output, shape index: {}]
  %s12 = sld [smem:[#allocation0]]
  $region77: #{tpu_custom_call.1} parent=0
    _
  %s14 = ssub.s32 1, %s12
  %s15 = scalar_select 0, %s14, %s12
  $region1: #{tpu_custom_call.1} parent=0
    #allocation2 [shape = 'u8[16384]{0}', space=vmem, size = 0x4000, scoped, tag = 'output window, operand 0']
    #allocation3 [shape = 's32[2]{0}', space=sflag, size = 0x8, scoped, tag = 'scoped memory for tpu_custom_call.1']
    %16 = vsyncpa [#allocation3], 0
    %s17 = scalar_lea.sflag [#allocation3], 1
    %18 = vsyncpa %s17, 0
    loop: start=0, step=1, limit=5
    $region2: #{tpu_custom_call.1} parent=1 // loop_pre_header
      _
    $region3: #{tpu_custom_call.1} parent=1 // loop_header
      %s20 = sphi 0, %s24
      %p21 = scmp.ge.s32.totalorder %s20, 5
      %s30 = sphi 0, %s32
      %s33 = sphi 0, %s30
      %s34 = sphi 0, %s33
      %s50 = sphi 0, %s34
      %s56 = sphi 0, %s58
      %s59 = sphi 0, %s56
      %s60 = sphi 0, %s59
      %s76 = sphi 0, %s60
      %s82 = sphi 0, %s84
      %s85 = sphi 0, %s82
      %s86 = sphi 0, %s85
      %s102 = sphi 0, %s86
      %s106 = sphi 0, %s106
      %s108 = sphi 0, %s106
      %s109 = sphi 0, %s108
      %s123 = sphi 0, %s109
      %s127 = sphi 0, %s127
      %s129 = sphi 0, %s127
      %s130 = sphi 0, %s129
      %s144 = sphi 0, %s130
      %s148 = sphi 0, %s148
      %s150 = sphi 0, %s148
      %s151 = sphi 0, %s150
      %s165 = sphi 0, %s151
      %s169 = sphi 0, %s169
      %s171 = sphi 0, %s169
      %s172 = sphi 0, %s171
      %s186 = sphi 0, %s172
      %s190 = sphi 0, %s190
      %s192 = sphi 0, %s190
      %s193 = sphi 0, %s192
      %s207 = sphi 0, %s193
      %s211 = sphi 0, %s211
      %s213 = sphi 0, %s211
      %s214 = sphi 0, %s213
      %s228 = sphi 0, %s214
      %s232 = sphi 0, %s232
      %s234 = sphi 0, %s232
      %s235 = sphi 0, %s234
      %s249 = sphi 0, %s235
      %s253 = sphi 0, %s253
      %s255 = sphi 0, %s253
      %s256 = sphi 0, %s255
      %s270 = sphi 0, %s256
      %s276 = sphi 0, %s278
      %s279 = sphi 0, %s276
      %s280 = sphi 0, %s279
      %s296 = sphi 0, %s280
    $region4: #{tpu_custom_call.1} parent=1 // loop_header_branch
      %23 = sbr.rel (%p21) target = $region8
    $region5: #{tpu_custom_call.1} parent=1 // loop_body
      %s25 = ssub.s32 %s20, 1
      %s26 = ssub.s32 %s20, 2
      %s27 = sadd.s32 %s20, 1
      %s28 = ssub.s32 %s20, %s27
      %p29 = scmp.eq.s32.totalorder %s28, 0
      %s31 = sadd.s32 %s30, 1
      %s32 = scalar_select %p29, %s30, %s31
      %p35 = pneg %p29
      %p36 = scmp.eq.s32.totalorder %s20, 2
      %p37 = por %p35, %p36
      %p38 = scmp.ne.s32.totalorder %s30, %s33
      %p39 = scmp.eq.s32.totalorder %s20, 0
      %p40 = por %p38, %p39
      %p41 = scmp.ne.s32.totalorder %s30, %s33
      %p42 = scmp.eq.s32.totalorder %s25, 2
      %p43 = por %p41, %p42
      %p44 = scmp.ne.s32.totalorder %s33, %s34
      %p45 = scmp.eq.s32.totalorder %s25, 0
      %p46 = por %p44, %p45
      %p47 = scmp.ne.s32.totalorder %s33, %s34
      %p48 = scmp.eq.s32.totalorder %s26, 2
      %p49 = por %p47, %p48
      %p51 = scmp.ne.s32.totalorder %s34, %s50
      %p52 = scmp.eq.s32.totalorder %s26, 0
      %p53 = por %p51, %p52
      %s54 = ssub.s32 %s20, %s27
      %p55 = scmp.eq.s32.totalorder %s54, 0
      %s57 = sadd.s32 %s56, 1
      %s58 = scalar_select %p55, %s56, %s57
      %p61 = pneg %p55
      %p62 = scmp.eq.s32.totalorder %s20, 2
      %p63 = por %p61, %p62
      %p64 = scmp.ne.s32.totalorder %s56, %s59
      %p65 = scmp.eq.s32.totalorder %s20, 0
      %p66 = por %p64, %p65
      %p67 = scmp.ne.s32.totalorder %s56, %s59
      %p68 = scmp.eq.s32.totalorder %s25, 2
      %p69 = por %p67, %p68
      %p70 = scmp.ne.s32.totalorder %s59, %s60
      %p71 = scmp.eq.s32.totalorder %s25, 0
      %p72 = por %p70, %p71
      %p73 = scmp.ne.s32.totalorder %s59, %s60
      %p74 = scmp.eq.s32.totalorder %s26, 2
      %p75 = por %p73, %p74
      %p77 = scmp.ne.s32.totalorder %s60, %s76
      %p78 = scmp.eq.s32.totalorder %s26, 0
      %p79 = por %p77, %p78
      %s80 = ssub.s32 %s20, %s27
      %p81 = scmp.eq.s32.totalorder %s80, 0
      %s83 = sadd.s32 %s82, 1
      %s84 = scalar_select %p81, %s82, %s83
      %p87 = pneg %p81
      %p88 = scmp.eq.s32.totalorder %s20, 2
      %p89 = por %p87, %p88
      %p90 = scmp.ne.s32.totalorder %s82, %s85
      %p91 = scmp.eq.s32.totalorder %s20, 0
      %p92 = por %p90, %p91
      %p93 = scmp.ne.s32.totalorder %s82, %s85
      %p94 = scmp.eq.s32.totalorder %s25, 2
      %p95 = por %p93, %p94
      %p96 = scmp.ne.s32.totalorder %s85, %s86
      %p97 = scmp.eq.s32.totalorder %s25, 0
      %p98 = por %p96, %p97
      %p99 = scmp.ne.s32.totalorder %s85, %s86
      %p100 = scmp.eq.s32.totalorder %s26, 2
      %p101 = por %p99, %p100
      %p103 = scmp.ne.s32.totalorder %s86, %s102
      %p104 = scmp.eq.s32.totalorder %s26, 0
      %p105 = por %p103, %p104
      %s107 = sadd.s32 %s106, 1
      %p110 = scmp.eq.s32.totalorder %s20, 2
      %p111 = scmp.ne.s32.totalorder %s106, %s108
      %p112 = scmp.eq.s32.totalorder %s20, 0
      %p113 = por %p111, %p112
      %p114 = scmp.ne.s32.totalorder %s106, %s108
      %p115 = scmp.eq.s32.totalorder %s25, 2
      %p116 = por %p114, %p115
      %p117 = scmp.ne.s32.totalorder %s108, %s109
      %p118 = scmp.eq.s32.totalorder %s25, 0
      %p119 = por %p117, %p118
      %p120 = scmp.ne.s32.totalorder %s108, %s109
      %p121 = scmp.eq.s32.totalorder %s26, 2
      %p122 = por %p120, %p121
      %p124 = scmp.ne.s32.totalorder %s109, %s123
      %p125 = scmp.eq.s32.totalorder %s26, 0
      %p126 = por %p124, %p125
      %s128 = sadd.s32 %s127, 1
      %p131 = scmp.eq.s32.totalorder %s20, 2
      %p132 = scmp.ne.s32.totalorder %s127, %s129
      %p133 = scmp.eq.s32.totalorder %s20, 0
      %p134 = por %p132, %p133
      %p135 = scmp.ne.s32.totalorder %s127, %s129
      %p136 = scmp.eq.s32.totalorder %s25, 2
      %p137 = por %p135, %p136
      %p138 = scmp.ne.s32.totalorder %s129, %s130
      %p139 = scmp.eq.s32.totalorder %s25, 0
      %p140 = por %p138, %p139
      %p141 = scmp.ne.s32.totalorder %s129, %s130
      %p142 = scmp.eq.s32.totalorder %s26, 2
      %p143 = por %p141, %p142
      %p145 = scmp.ne.s32.totalorder %s130, %s144
      %p146 = scmp.eq.s32.totalorder %s26, 0
      %p147 = por %p145, %p146
      %s149 = sadd.s32 %s148, 1
      %p152 = scmp.eq.s32.totalorder %s20, 2
      %p153 = scmp.ne.s32.totalorder %s148, %s150
      %p154 = scmp.eq.s32.totalorder %s20, 0
      %p155 = por %p153, %p154
      %p156 = scmp.ne.s32.totalorder %s148, %s150
      %p157 = scmp.eq.s32.totalorder %s25, 2
      %p158 = por %p156, %p157
      %p159 = scmp.ne.s32.totalorder %s150, %s151
      %p160 = scmp.eq.s32.totalorder %s25, 0
      %p161 = por %p159, %p160
      %p162 = scmp.ne.s32.totalorder %s150, %s151
      %p163 = scmp.eq.s32.totalorder %s26, 2
      %p164 = por %p162, %p163
      %p166 = scmp.ne.s32.totalorder %s151, %s165
      %p167 = scmp.eq.s32.totalorder %s26, 0
      %p168 = por %p166, %p167
      %s170 = sadd.s32 %s169, 1
      %p173 = scmp.eq.s32.totalorder %s20, 2
      %p174 = scmp.ne.s32.totalorder %s169, %s171
      %p175 = scmp.eq.s32.totalorder %s20, 0
      %p176 = por %p174, %p175
      %p177 = scmp.ne.s32.totalorder %s169, %s171
      %p178 = scmp.eq.s32.totalorder %s25, 2
      %p179 = por %p177, %p178
      %p180 = scmp.ne.s32.totalorder %s171, %s172
      %p181 = scmp.eq.s32.totalorder %s25, 0
      %p182 = por %p180, %p181
      %p183 = scmp.ne.s32.totalorder %s171, %s172
      %p184 = scmp.eq.s32.totalorder %s26, 2
      %p185 = por %p183, %p184
      %p187 = scmp.ne.s32.totalorder %s172, %s186
      %p188 = scmp.eq.s32.totalorder %s26, 0
      %p189 = por %p187, %p188
      %s191 = sadd.s32 %s190, 1
      %p194 = scmp.eq.s32.totalorder %s20, 2
      %p195 = scmp.ne.s32.totalorder %s190, %s192
      %p196 = scmp.eq.s32.totalorder %s20, 0
      %p197 = por %p195, %p196
      %p198 = scmp.ne.s32.totalorder %s190, %s192
      %p199 = scmp.eq.s32.totalorder %s25, 2
      %p200 = por %p198, %p199
      %p201 = scmp.ne.s32.totalorder %s192, %s193
      %p202 = scmp.eq.s32.totalorder %s25, 0
      %p203 = por %p201, %p202
      %p204 = scmp.ne.s32.totalorder %s192, %s193
      %p205 = scmp.eq.s32.totalorder %s26, 2
      %p206 = por %p204, %p205
      %p208 = scmp.ne.s32.totalorder %s193, %s207
      %p209 = scmp.eq.s32.totalorder %s26, 0
      %p210 = por %p208, %p209
      %s212 = sadd.s32 %s211, 1
      %p215 = scmp.eq.s32.totalorder %s20, 2
      %p216 = scmp.ne.s32.totalorder %s211, %s213
      %p217 = scmp.eq.s32.totalorder %s20, 0
      %p218 = por %p216, %p217
      %p219 = scmp.ne.s32.totalorder %s211, %s213
      %p220 = scmp.eq.s32.totalorder %s25, 2
      %p221 = por %p219, %p220
      %p222 = scmp.ne.s32.totalorder %s213, %s214
      %p223 = scmp.eq.s32.totalorder %s25, 0
      %p224 = por %p222, %p223
      %p225 = scmp.ne.s32.totalorder %s213, %s214
      %p226 = scmp.eq.s32.totalorder %s26, 2
      %p227 = por %p225, %p226
      %p229 = scmp.ne.s32.totalorder %s214, %s228
      %p230 = scmp.eq.s32.totalorder %s26, 0
      %p231 = por %p229, %p230
      %s233 = sadd.s32 %s232, 1
      %p236 = scmp.eq.s32.totalorder %s20, 2
      %p237 = scmp.ne.s32.totalorder %s232, %s234
      %p238 = scmp.eq.s32.totalorder %s20, 0
      %p239 = por %p237, %p238
      %p240 = scmp.ne.s32.totalorder %s232, %s234
      %p241 = scmp.eq.s32.totalorder %s25, 2
      %p242 = por %p240, %p241
      %p243 = scmp.ne.s32.totalorder %s234, %s235
      %p244 = scmp.eq.s32.totalorder %s25, 0
      %p245 = por %p243, %p244
      %p246 = scmp.ne.s32.totalorder %s234, %s235
      %p247 = scmp.eq.s32.totalorder %s26, 2
      %p248 = por %p246, %p247
      %p250 = scmp.ne.s32.totalorder %s235, %s249
      %p251 = scmp.eq.s32.totalorder %s26, 0
      %p252 = por %p250, %p251
      %s254 = sadd.s32 %s253, 1
      %p257 = scmp.eq.s32.totalorder %s20, 2
      %p258 = scmp.ne.s32.totalorder %s253, %s255
      %p259 = scmp.eq.s32.totalorder %s20, 0
      %p260 = por %p258, %p259
      %p261 = scmp.ne.s32.totalorder %s253, %s255
      %p262 = scmp.eq.s32.totalorder %s25, 2
      %p263 = por %p261, %p262
      %p264 = scmp.ne.s32.totalorder %s255, %s256
      %p265 = scmp.eq.s32.totalorder %s25, 0
      %p266 = por %p264, %p265
      %p267 = scmp.ne.s32.totalorder %s255, %s256
      %p268 = scmp.eq.s32.totalorder %s26, 2
      %p269 = por %p267, %p268
      %p271 = scmp.ne.s32.totalorder %s256, %s270
      %p272 = scmp.eq.s32.totalorder %s26, 0
      %p273 = por %p271, %p272
      %s274 = ssub.s32 %s20, %s27
      %p275 = scmp.eq.s32.totalorder %s274, 0
      %s277 = sadd.s32 %s276, 1
      %s278 = scalar_select %p275, %s276, %s277
      %p281 = pneg %p275
      %p282 = scmp.eq.s32.totalorder %s20, 2
      %p283 = por %p281, %p282
      %p284 = scmp.ne.s32.totalorder %s276, %s279
      %p285 = scmp.eq.s32.totalorder %s20, 0
      %p286 = por %p284, %p285
      %p287 = scmp.ne.s32.totalorder %s276, %s279
      %p288 = scmp.eq.s32.totalorder %s25, 2
      %p289 = por %p287, %p288
      %p290 = scmp.ne.s32.totalorder %s279, %s280
      %p291 = scmp.eq.s32.totalorder %s25, 0
      %p292 = por %p290, %p291
      %p293 = scmp.ne.s32.totalorder %s279, %s280
      %p294 = scmp.eq.s32.totalorder %s26, 2
      %p295 = por %p293, %p294
      %p297 = scmp.ne.s32.totalorder %s280, %s296
      %p298 = scmp.eq.s32.totalorder %s26, 0
      %p299 = por %p297, %p298
      %p300 = scmp.le.s32.totalorder 1, %s20
      %p301 = scmp.lt.s32.totalorder %s20, 4
      %p302 = pnand %p300, %p301
      %p303 = pneg %p302
      // Predicated region
      $region9: #{tpu_custom_call.1} parent=5 // pred_check
        _
      $region10: #{tpu_custom_call.1} parent=5 // pred_check_branch
        %305 = sbr.rel (%p302) target = $region12
      $region11: #{tpu_custom_call.1} parent=5 // pred_region
        %s306 = ssub.s32 %s20, 1
        // Predicated region
        $region13: #{tpu_custom_call.1} parent=11 // pred_check
          %p307 = pneg %p119
        $region14: #{tpu_custom_call.1} parent=11 // pred_check_branch
          %309 = sbr.rel (%p307) target = $region16
        $region15: #{tpu_custom_call.1} parent=11 // pred_region
          _
        $region16: #{tpu_custom_call.1} parent=11 // pred_fallthru
          _
        // Predicated region
        $region17: #{tpu_custom_call.1} parent=11 // pred_check
          %p310 = pneg %p140
        $region18: #{tpu_custom_call.1} parent=11 // pred_check_branch
          %312 = sbr.rel (%p310) target = $region20
        $region19: #{tpu_custom_call.1} parent=11 // pred_region
          _
        $region20: #{tpu_custom_call.1} parent=11 // pred_fallthru
          _
        // Predicated region
        $region21: #{tpu_custom_call.1} parent=11 // pred_check
          %p313 = pneg %p161
        $region22: #{tpu_custom_call.1} parent=11 // pred_check_branch
          %315 = sbr.rel (%p313) target = $region24
        $region23: #{tpu_custom_call.1} parent=11 // pred_region
          _
        $region24: #{tpu_custom_call.1} parent=11 // pred_fallthru
          _
        // Predicated region
        $region25: #{tpu_custom_call.1} parent=11 // pred_check
          %p316 = pneg %p182
        $region26: #{tpu_custom_call.1} parent=11 // pred_check_branch
          %318 = sbr.rel (%p316) target = $region28
        $region27: #{tpu_custom_call.1} parent=11 // pred_region
          _
        $region28: #{tpu_custom_call.1} parent=11 // pred_fallthru
          _
        // Predicated region
        $region29: #{tpu_custom_call.1} parent=11 // pred_check
          %p319 = pneg %p203
        $region30: #{tpu_custom_call.1} parent=11 // pred_check_branch
          %321 = sbr.rel (%p319) target = $region32
        $region31: #{tpu_custom_call.1} parent=11 // pred_region
          _
        $region32: #{tpu_custom_call.1} parent=11 // pred_fallthru
          _
        // Predicated region
        $region33: #{tpu_custom_call.1} parent=11 // pred_check
          %p322 = pneg %p224
        $region34: #{tpu_custom_call.1} parent=11 // pred_check_branch
          %324 = sbr.rel (%p322) target = $region36
        $region35: #{tpu_custom_call.1} parent=11 // pred_region
          _
        $region36: #{tpu_custom_call.1} parent=11 // pred_fallthru
          _
        // Predicated region
        $region37: #{tpu_custom_call.1} parent=11 // pred_check
          %p325 = pneg %p245
        $region38: #{tpu_custom_call.1} parent=11 // pred_check_branch
          %327 = sbr.rel (%p325) target = $region40
        $region39: #{tpu_custom_call.1} parent=11 // pred_region
          _
        $region40: #{tpu_custom_call.1} parent=11 // pred_fallthru
          _
        // Predicated region
        $region41: #{tpu_custom_call.1} parent=11 // pred_check
          %p328 = pneg %p266
        $region42: #{tpu_custom_call.1} parent=11 // pred_check_branch
          %330 = sbr.rel (%p328) target = $region44
        $region43: #{tpu_custom_call.1} parent=11 // pred_region
          _
        $region44: #{tpu_custom_call.1} parent=11 // pred_fallthru
          _
      $region12: #{tpu_custom_call.1} parent=5 // pred_fallthru
        _
      %p331 = scmp.lt.s32.totalorder %s20, 3
      // Predicated region
      $region45: #{tpu_custom_call.1} parent=5 // pred_check
        %p332 = pneg %p331
      $region46: #{tpu_custom_call.1} parent=5 // pred_check_branch
        %334 = sbr.rel (%p332) target = $region48
      $region47: #{tpu_custom_call.1} parent=5 // pred_region
        // Predicated region
        $region49: #{tpu_custom_call.1} parent=47 // pred_check
          %p335 = pneg %p40
        $region50: #{tpu_custom_call.1} parent=47 // pred_check_branch
          %337 = sbr.rel (%p335) target = $region52
        $region51: #{tpu_custom_call.1} parent=47 // pred_region
          %s338 = smul.u32 2, %s20
          %p339 = scmp.lt.s32.totalorder %s338, 5
          %s340 = scalar_select %p339, %s338, 5
          %s341 = smul.addr %s340, 8
          %s342 = smul.addr %s341, 8
          %s343 = scalar_lea.vmem %s0, %s342
          %s344 = smul.u32 2, %s20
        $region52: #{tpu_custom_call.1} parent=47 // pred_fallthru
          _
        // Predicated region
        $region53: #{tpu_custom_call.1} parent=47 // pred_check
          %p345 = pneg %p66
        $region54: #{tpu_custom_call.1} parent=47 // pred_check_branch
          %347 = sbr.rel (%p345) target = $region56
        $region55: #{tpu_custom_call.1} parent=47 // pred_region
          %s348 = smul.u32 2, %s20
          %p349 = scmp.lt.s32.totalorder %s348, 5
          %s350 = scalar_select %p349, %s348, 5
          %s351 = scalar_lea.vmem %s1, %s350
          %s352 = smul.u32 2, %s20
        $region56: #{tpu_custom_call.1} parent=47 // pred_fallthru
          _
        // Predicated region
        $region57: #{tpu_custom_call.1} parent=47 // pred_check
          %p353 = pneg %p92
        $region58: #{tpu_custom_call.1} parent=47 // pred_check_branch
          %355 = sbr.rel (%p353) target = $region60
        $region59: #{tpu_custom_call.1} parent=47 // pred_region
          %s356 = smul.u32 2, %s20
          %p357 = scmp.lt.s32.totalorder %s356, 5
          %s358 = scalar_select %p357, %s356, 5
          %s359 = scalar_lea.vmem %s2, %s358
          %s360 = smul.u32 2, %s20
        $region60: #{tpu_custom_call.1} parent=47 // pred_fallthru
          _
      $region48: #{tpu_custom_call.1} parent=5 // pred_fallthru
        _
      %p361 = scmp.le.s32.totalorder 1, %s20
      %p362 = scmp.lt.s32.totalorder %s20, 4
      %p363 = pnand %p361, %p362
      %p364 = pneg %p363
      // Predicated region
      $region61: #{tpu_custom_call.1} parent=5 // pred_check
        _
      $region62: #{tpu_custom_call.1} parent=5 // pred_check_branch
        %366 = sbr.rel (%p363) target = $region64
      $region63: #{tpu_custom_call.1} parent=5 // pred_region
        %s367 = ssub.s32 %s20, 1
        %s368 = smul.u32 2, %s25
        %p369 = scmp.lt.s32.totalorder %s368, 5
        %s370 = scalar_select %p369, %s368, 5
        %s371 = smul.addr %s370, 8
        %s372 = smul.addr %s371, 8
        %s373 = scalar_lea.vmem %s0, %s372
        %p374 = pneg %p46
        %p375 = pneg %p43
        %s376 = smul.u32 2, %s25
        %p377 = scmp.lt.s32.totalorder %s376, 5
        %s378 = scalar_select %p377, %s376, 5
        %s379 = scalar_lea.vmem %s1, %s378
        %p380 = pneg %p72
        %p381 = pneg %p69
        %s382 = smul.u32 2, %s25
        %p383 = scmp.lt.s32.totalorder %s382, 5
        %s384 = scalar_select %p383, %s382, 5
        %s385 = scalar_lea.vmem %s2, %s384
        %p386 = pneg %p98
        %p387 = pneg %p95
        %p388 = pneg %p119
        %p389 = pneg %p116
        %p390 = pneg %p140
        %p391 = pneg %p137
        %p392 = pneg %p161
        %p393 = pneg %p158
        %p394 = pneg %p182
        %p395 = pneg %p179
        %p396 = pneg %p203
        %p397 = pneg %p200
        %p398 = pneg %p224
        %p399 = pneg %p221
        %p400 = pneg %p245
        %p401 = pneg %p242
        %p402 = pneg %p266
        %p403 = pneg %p263
        %p404 = pneg %p292
        %p405 = pneg %p289
        %s406 = sand.u32 %s279, 1
        %s407 = scalar_lea.sflag [#allocation3], %s406
        %s408 = sand.u32 %s279, 1
        %s409 = smul.addr %s408, 16
        %s410 = scalar_lea.vmem [#allocation2], %s409
        %s411 = smul.u32 2, %s25
        %p412 = scmp.lt.s32.totalorder %s411, 5
        %s413 = scalar_select %p412, %s411, 5
        %s414 = smul.addr %s413, 8
        %s415 = smul.addr %s414, 8
        %s416 = scalar_lea.vmem %s0, %s415
        %s417 = smul.u32 2, %s25
        %s418 = smul.u32 2, %s25
        %p419 = scmp.lt.s32.totalorder %s418, 5
        %s420 = scalar_select %p419, %s418, 5
        %s421 = scalar_lea.vmem %s1, %s420
        %s422 = smul.u32 2, %s25
        %s423 = smul.u32 2, %s25
        %p424 = scmp.lt.s32.totalorder %s423, 5
        %s425 = scalar_select %p424, %s423, 5
        %s426 = scalar_lea.vmem %s2, %s425
        %s427 = smul.u32 2, %s25
        %s428 = smul.u32 2, %s25
        %v429 = vld [vmem:[%s416] sm:$0xff]
        %v430 = vld [vmem:[%s416 + $0x8] sm:$0xff]
        %v431 = vld [vmem:[%s416 + $0x10] sm:$0xff]
        %v432 = vld [vmem:[%s416 + $0x18] sm:$0xff]
        %v433 = vld [vmem:[%s416 + $0x20] sm:$0xff]
        %v434 = vld [vmem:[%s416 + $0x28] sm:$0xff]
        %v435 = vld [vmem:[%s416 + $0x30] sm:$0xff]
        %v436 = vld [vmem:[%s416 + $0x38] sm:$0xff]
        %v437 = vld [vmem:[%s416 + $0x40] sm:$0xff]
        %v438 = vld [vmem:[%s416 + $0x48] sm:$0xff]
        %v439 = vld [vmem:[%s416 + $0x50] sm:$0xff]
        %v440 = vld [vmem:[%s416 + $0x58] sm:$0xff]
        %v441 = vld [vmem:[%s416 + $0x60] sm:$0xff]
        %v442 = vld [vmem:[%s416 + $0x68] sm:$0xff]
        %v443 = vld [vmem:[%s416 + $0x70] sm:$0xff]
        %v444 = vld [vmem:[%s416 + $0x78] sm:$0xff]
        %v445 = vld [vmem:[%s3] sm:$0x7]
        %vm446 = vcmask 23552
        %v448 = vsel %vm446, %v429, 0
        %v451 = vsel %vm446, %v430, 0
        %v454 = vsel %vm446, %v431, 0
        %v457 = vsel %vm446, %v432, 0
        %v460 = vsel %vm446, %v433, 0
        %v463 = vsel %vm446, %v434, 0
        %v466 = vsel %vm446, %v435, 0
        %v469 = vsel %vm446, %v436, 0
        %v472 = vsel %vm446, %v437, 0
        %v475 = vsel %vm446, %v438, 0
        %v478 = vsel %vm446, %v439, 0
        %v481 = vsel %vm446, %v440, 0
        %v484 = vsel %vm446, %v441, 0
        %v487 = vsel %vm446, %v442, 0
        %v490 = vsel %vm446, %v443, 0
        %v493 = vsel %vm446, %v444, 0
        %vm495 = vcmask 1042432
        %v497 = vsel %vm495, %v445, 0
        %499 = vmatprep.subr.mxu0 0.0
        %500 = vmatpush1.msra.mxu0 0.0
        %501 = vmatprep.subr.mxu0 0.0
        %502 = vmatpush1.msra.mxu0 0.0
        %503 = vmatprep.subr.mxu0 0.0
        %504 = vmatpush1.msra.mxu0 0.0
        %505 = vmatprep.subr.mxu0 0.0
        %506 = vmatpush1.msra.mxu0 0.0
        %507 = vmatprep.subr.mxu0 0.0
        %508 = vmatpush1.msra.mxu0 0.0
        %509 = vmatprep.subr.mxu0 0.0
        %510 = vmatpush1.msra.mxu0 0.0
        %511 = vmatprep.subr.mxu0 0.0
        %512 = vmatpush1.msra.mxu0 0.0
        %513 = vmatprep.subr.mxu0 0.0
        %514 = vmatpush1.msra.mxu0 0.0
        %515 = vmatprep.subr.mxu0 0.0
        %516 = vmatpush1.msra.mxu0 0.0
        %517 = vmatprep.subr.mxu0 0.0
        %518 = vmatpush1.msra.mxu0 0.0
        %519 = vmatprep.subr.mxu0 0.0
        %520 = vmatpush1.msra.mxu0 0.0
        %521 = vmatprep.subr.mxu0 0.0
        %522 = vmatpush1.msra.mxu0 0.0
        %523 = vmatprep.subr.mxu0 0.0
        %524 = vmatpush1.msra.mxu0 0.0
        %525 = vmatprep.subr.mxu0 0.0
        %526 = vmatpush1.msra.mxu0 0.0
        %527 = vmatprep.subr.mxu0 0.0
        %528 = vmatpush1.msra.mxu0 0.0
        %529 = vmatprep.subr.mxu0 0.0
        %530 = vmatpush1.msra.mxu0 %v497
        %531 = vmatprep.subr.mxu0 0.0
        %532 = vmatpush2.msra.mxu0 0.0
        %533 = vmatprep.subr.mxu0 0.0
        %534 = vmatpush2.msra.mxu0 0.0
        %535 = vmatprep.subr.mxu0 0.0
        %536 = vmatpush2.msra.mxu0 0.0
        %537 = vmatprep.subr.mxu0 0.0
        %538 = vmatpush2.msra.mxu0 0.0
        %539 = vmatprep.subr.mxu0 0.0
        %540 = vmatpush2.msra.mxu0 0.0
        %541 = vmatprep.subr.mxu0 0.0
        %542 = vmatpush2.msra.mxu0 0.0
        %543 = vmatprep.subr.mxu0 0.0
        %544 = vmatpush2.msra.mxu0 0.0
        %545 = vmatprep.subr.mxu0 0.0
        %546 = vmatpush2.msra.mxu0 0.0
        %547 = vmatprep.subr.mxu0 0.0
        %548 = vmatpush2.msra.mxu0 0.0
        %549 = vmatprep.subr.mxu0 0.0
        %550 = vmatpush2.msra.mxu0 0.0
        %551 = vmatprep.subr.mxu0 0.0
        %552 = vmatpush2.msra.mxu0 0.0
        %553 = vmatprep.subr.mxu0 0.0
        %554 = vmatpush2.msra.mxu0 0.0
        %555 = vmatprep.subr.mxu0 0.0
        %556 = vmatpush2.msra.mxu0 0.0
        %557 = vmatprep.subr.mxu0 0.0
        %558 = vmatpush2.msra.mxu0 0.0
        %559 = vmatprep.subr.mxu0 0.0
        %560 = vmatpush2.msra.mxu0 0.0
        %561 = vmatprep.subr.mxu0 0.0
        %562 = vmatpush2.msra.mxu0 0.0
        %563 = vmatprep.mubr.f32.mxu0 0.0
        %564 = vmatmul.mubr.f32.gmra.mxu0 %v448
        %v565 = vpop.f32.mrf.mxu0
        %v566 = vadd.f32 0.0, %v565
        %v567 = vpop.f32.mrf.mxu0
        %568 = vmatprep.mubr.f32.mxu0 0.0
        %569 = vmatmul.mubr.f32.gmra.mxu0 %v451
        %v570 = vpop.f32.mrf.mxu0
        %v571 = vadd.f32 0.0, %v570
        %v572 = vpop.f32.mrf.mxu0
        %573 = vmatprep.mubr.f32.mxu0 0.0
        %574 = vmatmul.mubr.f32.gmra.mxu0 %v454
        %v575 = vpop.f32.mrf.mxu0
        %v576 = vadd.f32 0.0, %v575
        %v577 = vpop.f32.mrf.mxu0
        %578 = vmatprep.mubr.f32.mxu0 0.0
        %579 = vmatmul.mubr.f32.gmra.mxu0 %v457
        %v580 = vpop.f32.mrf.mxu0
        %v581 = vadd.f32 0.0, %v580
        %v582 = vpop.f32.mrf.mxu0
        %583 = vmatprep.mubr.f32.mxu0 0.0
        %584 = vmatmul.mubr.f32.gmra.mxu0 %v460
        %v585 = vpop.f32.mrf.mxu0
        %v586 = vadd.f32 0.0, %v585
        %v587 = vpop.f32.mrf.mxu0
        %588 = vmatprep.mubr.f32.mxu0 0.0
        %589 = vmatmul.mubr.f32.gmra.mxu0 %v463
        %v590 = vpop.f32.mrf.mxu0
        %v591 = vadd.f32 0.0, %v590
        %v592 = vpop.f32.mrf.mxu0
        %593 = vmatprep.mubr.f32.mxu0 0.0
        %594 = vmatmul.mubr.f32.gmra.mxu0 %v466
        %v595 = vpop.f32.mrf.mxu0
        %v596 = vadd.f32 0.0, %v595
        %v597 = vpop.f32.mrf.mxu0
        %598 = vmatprep.mubr.f32.mxu0 0.0
        %599 = vmatmul.mubr.f32.gmra.mxu0 %v469
        %v600 = vpop.f32.mrf.mxu0
        %v601 = vadd.f32 0.0, %v600
        %v602 = vpop.f32.mrf.mxu0
        %603 = vmatprep.mubr.f32.mxu0 0.0
        %604 = vmatmul.mubr.f32.gmra.mxu0 %v472
        %v605 = vpop.f32.mrf.mxu0
        %v606 = vadd.f32 0.0, %v605
        %v607 = vpop.f32.mrf.mxu0
        %608 = vmatprep.mubr.f32.mxu0 0.0
        %609 = vmatmul.mubr.f32.gmra.mxu0 %v475
        %v610 = vpop.f32.mrf.mxu0
        %v611 = vadd.f32 0.0, %v610
        %v612 = vpop.f32.mrf.mxu0
        %613 = vmatprep.mubr.f32.mxu0 0.0
        %614 = vmatmul.mubr.f32.gmra.mxu0 %v478
        %v615 = vpop.f32.mrf.mxu0
        %v616 = vadd.f32 0.0, %v615
        %v617 = vpop.f32.mrf.mxu0
        %618 = vmatprep.mubr.f32.mxu0 0.0
        %619 = vmatmul.mubr.f32.gmra.mxu0 %v481
        %v620 = vpop.f32.mrf.mxu0
        %v621 = vadd.f32 0.0, %v620
        %v622 = vpop.f32.mrf.mxu0
        %623 = vmatprep.mubr.f32.mxu0 0.0
        %624 = vmatmul.mubr.f32.gmra.mxu0 %v484
        %v625 = vpop.f32.mrf.mxu0
        %v626 = vadd.f32 0.0, %v625
        %v627 = vpop.f32.mrf.mxu0
        %628 = vmatprep.mubr.f32.mxu0 0.0
        %629 = vmatmul.mubr.f32.gmra.mxu0 %v487
        %v630 = vpop.f32.mrf.mxu0
        %v631 = vadd.f32 0.0, %v630
        %v632 = vpop.f32.mrf.mxu0
        %633 = vmatprep.mubr.f32.mxu0 0.0
        %634 = vmatmul.mubr.f32.gmra.mxu0 %v490
        %v635 = vpop.f32.mrf.mxu0
        %v636 = vadd.f32 0.0, %v635
        %v637 = vpop.f32.mrf.mxu0
        %638 = vmatprep.mubr.f32.mxu0 0.0
        %639 = vmatmul.mubr.f32.gmra.mxu0 %v493
        %v640 = vpop.f32.mrf.mxu0
        %v641 = vadd.f32 0.0, %v640
        %v642 = vpop.f32.mrf.mxu0
        %643 = vdwg.mxu0
        %v644 = vmax.f32 %v566, 0.0
        %v645 = vmax.f32 %v571, 0.0
        %v646 = vmax.f32 %v576, 0.0
        %v647 = vmax.f32 %v581, 0.0
        %v648 = vmax.f32 %v586, 0.0
        %v649 = vmax.f32 %v591, 0.0
        %v650 = vmax.f32 %v596, 0.0
        %v651 = vmax.f32 %v601, 0.0
        %v652 = vmax.f32 %v606, 0.0
        %v653 = vmax.f32 %v611, 0.0
        %v654 = vmax.f32 %v616, 0.0
        %v655 = vmax.f32 %v621, 0.0
        %v656 = vmax.f32 %v626, 0.0
        %v657 = vmax.f32 %v631, 0.0
        %v658 = vmax.f32 %v636, 0.0
        %v659 = vmax.f32 %v641, 0.0
        %v660 = vld [vmem:[%s4] sm:$0xff]
        %v661 = vld [vmem:[%s4 + $0x8] sm:$0xff]
        %v662 = vld [vmem:[%s4 + $0x10] sm:$0xff]
        %v663 = vld [vmem:[%s4 + $0x18] sm:$0xff]
        %v664 = vld [vmem:[%s4 + $0x20] sm:$0xff]
        %v665 = vld [vmem:[%s4 + $0x28] sm:$0xff]
        %vm666 = vcmask 392192
        %v668 = vsel %vm666, %v644, 0
        %v671 = vsel %vm666, %v645, 0
        %v674 = vsel %vm666, %v646, 0
        %v677 = vsel %vm666, %v647, 0
        %v680 = vsel %vm666, %v648, 0
        %v683 = vsel %vm666, %v649, 0
        %v686 = vsel %vm666, %v650, 0
        %v689 = vsel %vm666, %v651, 0
        %v692 = vsel %vm666, %v652, 0
        %v695 = vsel %vm666, %v653, 0
        %v698 = vsel %vm666, %v654, 0
        %v701 = vsel %vm666, %v655, 0
        %v704 = vsel %vm666, %v656, 0
        %v707 = vsel %vm666, %v657, 0
        %v710 = vsel %vm666, %v658, 0
        %v713 = vsel %vm666, %v659, 0
        %715 = vmatprep.subr.mxu0 0.0
        %716 = vmatpush1.msra.mxu0 0.0
        %717 = vmatprep.subr.mxu0 0.0
        %718 = vmatpush1.msra.mxu0 0.0
        %719 = vmatprep.subr.mxu0 0.0
        %720 = vmatpush1.msra.mxu0 0.0
        %721 = vmatprep.subr.mxu0 0.0
        %722 = vmatpush1.msra.mxu0 0.0
        %723 = vmatprep.subr.mxu0 0.0
        %724 = vmatpush1.msra.mxu0 0.0
        %725 = vmatprep.subr.mxu0 0.0
        %726 = vmatpush1.msra.mxu0 0.0
        %727 = vmatprep.subr.mxu0 0.0
        %728 = vmatpush1.msra.mxu0 0.0
        %729 = vmatprep.subr.mxu0 0.0
        %730 = vmatpush1.msra.mxu0 0.0
        %731 = vmatprep.subr.mxu0 0.0
        %732 = vmatpush1.msra.mxu0 0.0
        %733 = vmatprep.subr.mxu0 0.0
        %734 = vmatpush1.msra.mxu0 0.0
        %735 = vmatprep.subr.mxu0 0.0
        %736 = vmatpush1.msra.mxu0 %v665
        %737 = vmatprep.subr.mxu0 0.0
        %738 = vmatpush1.msra.mxu0 %v664
        %739 = vmatprep.subr.mxu0 0.0
        %740 = vmatpush1.msra.mxu0 %v663
        %741 = vmatprep.subr.mxu0 0.0
        %742 = vmatpush1.msra.mxu0 %v662
        %743 = vmatprep.subr.mxu0 0.0
        %744 = vmatpush1.msra.mxu0 %v661
        %745 = vmatprep.subr.mxu0 0.0
        %746 = vmatpush1.msra.mxu0 %v660
        %747 = vmatprep.subr.mxu0 0.0
        %748 = vmatpush2.msra.mxu0 0.0
        %749 = vmatprep.subr.mxu0 0.0
        %750 = vmatpush2.msra.mxu0 0.0
        %751 = vmatprep.subr.mxu0 0.0
        %752 = vmatpush2.msra.mxu0 0.0
        %753 = vmatprep.subr.mxu0 0.0
        %754 = vmatpush2.msra.mxu0 0.0
        %755 = vmatprep.subr.mxu0 0.0
        %756 = vmatpush2.msra.mxu0 0.0
        %757 = vmatprep.subr.mxu0 0.0
        %758 = vmatpush2.msra.mxu0 0.0
        %759 = vmatprep.subr.mxu0 0.0
        %760 = vmatpush2.msra.mxu0 0.0
        %761 = vmatprep.subr.mxu0 0.0
        %762 = vmatpush2.msra.mxu0 0.0
        %763 = vmatprep.subr.mxu0 0.0
        %764 = vmatpush2.msra.mxu0 0.0
        %765 = vmatprep.subr.mxu0 0.0
        %766 = vmatpush2.msra.mxu0 0.0
        %767 = vmatprep.subr.mxu0 0.0
        %768 = vmatpush2.msra.mxu0 0.0
        %769 = vmatprep.subr.mxu0 0.0
        %770 = vmatpush2.msra.mxu0 0.0
        %771 = vmatprep.subr.mxu0 0.0
        %772 = vmatpush2.msra.mxu0 0.0
        %773 = vmatprep.subr.mxu0 0.0
        %774 = vmatpush2.msra.mxu0 0.0
        %775 = vmatprep.subr.mxu0 0.0
        %776 = vmatpush2.msra.mxu0 0.0
        %777 = vmatprep.subr.mxu0 0.0
        %778 = vmatpush2.msra.mxu0 0.0
        %779 = vmatprep.mubr.f32.mxu0 0.0
        %780 = vmatmul.mubr.f32.gmra.mxu0 %v668
        %v781 = vpop.f32.mrf.mxu0
        %v782 = vadd.f32 0.0, %v781
        %v783 = vpop.f32.mrf.mxu0
        %784 = vmatprep.mubr.f32.mxu0 0.0
        %785 = vmatmul.mubr.f32.gmra.mxu0 %v671
        %v786 = vpop.f32.mrf.mxu0
        %v787 = vadd.f32 0.0, %v786
        %v788 = vpop.f32.mrf.mxu0
        %789 = vmatprep.mubr.f32.mxu0 0.0
        %790 = vmatmul.mubr.f32.gmra.mxu0 %v674
        %v791 = vpop.f32.mrf.mxu0
        %v792 = vadd.f32 0.0, %v791
        %v793 = vpop.f32.mrf.mxu0
        %794 = vmatprep.mubr.f32.mxu0 0.0
        %795 = vmatmul.mubr.f32.gmra.mxu0 %v677
        %v796 = vpop.f32.mrf.mxu0
        %v797 = vadd.f32 0.0, %v796
        %v798 = vpop.f32.mrf.mxu0
        %799 = vmatprep.mubr.f32.mxu0 0.0
        %800 = vmatmul.mubr.f32.gmra.mxu0 %v680
        %v801 = vpop.f32.mrf.mxu0
        %v802 = vadd.f32 0.0, %v801
        %v803 = vpop.f32.mrf.mxu0
        %804 = vmatprep.mubr.f32.mxu0 0.0
        %805 = vmatmul.mubr.f32.gmra.mxu0 %v683
        %v806 = vpop.f32.mrf.mxu0
        %v807 = vadd.f32 0.0, %v806
        %v808 = vpop.f32.mrf.mxu0
        %809 = vmatprep.mubr.f32.mxu0 0.0
        %810 = vmatmul.mubr.f32.gmra.mxu0 %v686
        %v811 = vpop.f32.mrf.mxu0
        %v812 = vadd.f32 0.0, %v811
        %v813 = vpop.f32.mrf.mxu0
        %814 = vmatprep.mubr.f32.mxu0 0.0
        %815 = vmatmul.mubr.f32.gmra.mxu0 %v689
        %v816 = vpop.f32.mrf.mxu0
        %v817 = vadd.f32 0.0, %v816
        %v818 = vpop.f32.mrf.mxu0
        %819 = vmatprep.mubr.f32.mxu0 0.0
        %820 = vmatmul.mubr.f32.gmra.mxu0 %v692
        %v821 = vpop.f32.mrf.mxu0
        %v822 = vadd.f32 0.0, %v821
        %v823 = vpop.f32.mrf.mxu0
        %824 = vmatprep.mubr.f32.mxu0 0.0
        %825 = vmatmul.mubr.f32.gmra.mxu0 %v695
        %v826 = vpop.f32.mrf.mxu0
        %v827 = vadd.f32 0.0, %v826
        %v828 = vpop.f32.mrf.mxu0
        %829 = vmatprep.mubr.f32.mxu0 0.0
        %830 = vmatmul.mubr.f32.gmra.mxu0 %v698
        %v831 = vpop.f32.mrf.mxu0
        %v832 = vadd.f32 0.0, %v831
        %v833 = vpop.f32.mrf.mxu0
        %834 = vmatprep.mubr.f32.mxu0 0.0
        %835 = vmatmul.mubr.f32.gmra.mxu0 %v701
        %v836 = vpop.f32.mrf.mxu0
        %v837 = vadd.f32 0.0, %v836
        %v838 = vpop.f32.mrf.mxu0
        %839 = vmatprep.mubr.f32.mxu0 0.0
        %840 = vmatmul.mubr.f32.gmra.mxu0 %v704
        %v841 = vpop.f32.mrf.mxu0
        %v842 = vadd.f32 0.0, %v841
        %v843 = vpop.f32.mrf.mxu0
        %844 = vmatprep.mubr.f32.mxu0 0.0
        %845 = vmatmul.mubr.f32.gmra.mxu0 %v707
        %v846 = vpop.f32.mrf.mxu0
        %v847 = vadd.f32 0.0, %v846
        %v848 = vpop.f32.mrf.mxu0
        %849 = vmatprep.mubr.f32.mxu0 0.0
        %850 = vmatmul.mubr.f32.gmra.mxu0 %v710
        %v851 = vpop.f32.mrf.mxu0
        %v852 = vadd.f32 0.0, %v851
        %v853 = vpop.f32.mrf.mxu0
        %854 = vmatprep.mubr.f32.mxu0 0.0
        %855 = vmatmul.mubr.f32.gmra.mxu0 %v713
        %v856 = vpop.f32.mrf.mxu0
        %v857 = vadd.f32 0.0, %v856
        %v858 = vpop.f32.mrf.mxu0
        %859 = vdwg.mxu0
        %v860 = vld [vmem:[%s421] sm:$0x1]
        %v861 = vld [vmem:[%s421 + $0x1] sm:$0x1]
        %v862 = vadd.f32 %v860, 1.0
        %v863 = vadd.f32 %v861, 1.0
        %v866 = vlaneseq
        %v867 = vshrl.u32 %v866, 7
        %v868 = vsub.s32 0, %v867
        %v869 = vrot.slane %v862, %v868
        %v870 = vlaneseq
        %v871 = vshrl.u32 %v870, 7
        %v872 = vsub.s32 0, %v871
        %v873 = vrot.slane %v863, %v872
        %v876 = vmul.f32 %v869, %v782
        %v877 = vmul.f32 %v869, %v787
        %v878 = vmul.f32 %v869, %v792
        %v879 = vmul.f32 %v869, %v797
        %v880 = vmul.f32 %v869, %v802
        %v881 = vmul.f32 %v869, %v807
        %v882 = vmul.f32 %v869, %v812
        %v883 = vmul.f32 %v869, %v817
        %v884 = vmul.f32 %v873, %v822
        %v885 = vmul.f32 %v873, %v827
        %v886 = vmul.f32 %v873, %v832
        %v887 = vmul.f32 %v873, %v837
        %v888 = vmul.f32 %v873, %v842
        %v889 = vmul.f32 %v873, %v847
        %v890 = vmul.f32 %v873, %v852
        %v891 = vmul.f32 %v873, %v857
        %v892 = vld [vmem:[%s426] sm:$0x1]
        %v893 = vld [vmem:[%s426 + $0x1] sm:$0x1]
        %v896 = vlaneseq
        %v897 = vshrl.u32 %v896, 7
        %v898 = vsub.s32 0, %v897
        %v899 = vrot.slane %v892, %v898
        %v900 = vlaneseq
        %v901 = vshrl.u32 %v900, 7
        %v902 = vsub.s32 0, %v901
        %v903 = vrot.slane %v893, %v902
        %v906 = vadd.f32 %v876, %v899
        %v907 = vadd.f32 %v877, %v899
        %v908 = vadd.f32 %v878, %v899
        %v909 = vadd.f32 %v879, %v899
        %v910 = vadd.f32 %v880, %v899
        %v911 = vadd.f32 %v881, %v899
        %v912 = vadd.f32 %v882, %v899
        %v913 = vadd.f32 %v883, %v899
        %v914 = vadd.f32 %v884, %v903
        %v915 = vadd.f32 %v885, %v903
        %v916 = vadd.f32 %v886, %v903
        %v917 = vadd.f32 %v887, %v903
        %v918 = vadd.f32 %v888, %v903
        %v919 = vadd.f32 %v889, %v903
        %v920 = vadd.f32 %v890, %v903
        %v921 = vadd.f32 %v891, %v903
        %922 = vadd.xlane.f32.xlu0 %v906
        %v923 = vpop.xlane.xlu0 %922
        %924 = vadd.xlane.f32.xlu0 %v907
        %v925 = vpop.xlane.xlu0 %924
        %926 = vadd.xlane.f32.xlu0 %v908
        %v927 = vpop.xlane.xlu0 %926
        %928 = vadd.xlane.f32.xlu0 %v909
        %v929 = vpop.xlane.xlu0 %928
        %930 = vadd.xlane.f32.xlu0 %v910
        %v931 = vpop.xlane.xlu0 %930
        %932 = vadd.xlane.f32.xlu0 %v911
        %v933 = vpop.xlane.xlu0 %932
        %934 = vadd.xlane.f32.xlu0 %v912
        %v935 = vpop.xlane.xlu0 %934
        %936 = vadd.xlane.f32.xlu0 %v913
        %v937 = vpop.xlane.xlu0 %936
        %938 = vadd.xlane.f32.xlu0 %v914
        %v939 = vpop.xlane.xlu0 %938
        %940 = vadd.xlane.f32.xlu0 %v915
        %v941 = vpop.xlane.xlu0 %940
        %942 = vadd.xlane.f32.xlu0 %v916
        %v943 = vpop.xlane.xlu0 %942
        %944 = vadd.xlane.f32.xlu0 %v917
        %v945 = vpop.xlane.xlu0 %944
        %946 = vadd.xlane.f32.xlu0 %v918
        %v947 = vpop.xlane.xlu0 %946
        %948 = vadd.xlane.f32.xlu0 %v919
        %v949 = vpop.xlane.xlu0 %948
        %950 = vadd.xlane.f32.xlu0 %v920
        %v951 = vpop.xlane.xlu0 %950
        %952 = vadd.xlane.f32.xlu0 %v921
        %v953 = vpop.xlane.xlu0 %952
        %v954 = vrcp.pop 128.0
        %v955 = vmul.f32 %v923, %v954
        %v956 = vmul.f32 %v925, %v954
        %v957 = vmul.f32 %v927, %v954
        %v958 = vmul.f32 %v929, %v954
        %v959 = vmul.f32 %v931, %v954
        %v960 = vmul.f32 %v933, %v954
        %v961 = vmul.f32 %v935, %v954
        %v962 = vmul.f32 %v937, %v954
        %v963 = vmul.f32 %v939, %v954
        %v964 = vmul.f32 %v941, %v954
        %v965 = vmul.f32 %v943, %v954
        %v966 = vmul.f32 %v945, %v954
        %v967 = vmul.f32 %v947, %v954
        %v968 = vmul.f32 %v949, %v954
        %v969 = vmul.f32 %v951, %v954
        %v970 = vmul.f32 %v953, %v954
        %v971 = vsub.f32 %v906, %v955
        %v972 = vsub.f32 %v907, %v956
        %v973 = vsub.f32 %v908, %v957
        %v974 = vsub.f32 %v909, %v958
        %v975 = vsub.f32 %v910, %v959
        %v976 = vsub.f32 %v911, %v960
        %v977 = vsub.f32 %v912, %v961
        %v978 = vsub.f32 %v913, %v962
        %v979 = vsub.f32 %v914, %v963
        %v980 = vsub.f32 %v915, %v964
        %v981 = vsub.f32 %v916, %v965
        %v982 = vsub.f32 %v917, %v966
        %v983 = vsub.f32 %v918, %v967
        %v984 = vsub.f32 %v919, %v968
        %v985 = vsub.f32 %v920, %v969
        %v986 = vsub.f32 %v921, %v970
        %v987 = vmul.f32 %v971, %v971
        %v988 = vmul.f32 %v972, %v972
        %v989 = vmul.f32 %v973, %v973
        %v990 = vmul.f32 %v974, %v974
        %v991 = vmul.f32 %v975, %v975
        %v992 = vmul.f32 %v976, %v976
        %v993 = vmul.f32 %v977, %v977
        %v994 = vmul.f32 %v978, %v978
        %v995 = vmul.f32 %v979, %v979
        %v996 = vmul.f32 %v980, %v980
        %v997 = vmul.f32 %v981, %v981
        %v998 = vmul.f32 %v982, %v982
        %v999 = vmul.f32 %v983, %v983
        %v1000 = vmul.f32 %v984, %v984
        %v1001 = vmul.f32 %v985, %v985
        %v1002 = vmul.f32 %v986, %v986
        %1003 = vadd.xlane.f32.xlu0 %v987
        %v1004 = vpop.xlane.xlu0 %1003
        %1005 = vadd.xlane.f32.xlu0 %v988
        %v1006 = vpop.xlane.xlu0 %1005
        %1007 = vadd.xlane.f32.xlu0 %v989
        %v1008 = vpop.xlane.xlu0 %1007
        %1009 = vadd.xlane.f32.xlu0 %v990
        %v1010 = vpop.xlane.xlu0 %1009
        %1011 = vadd.xlane.f32.xlu0 %v991
        %v1012 = vpop.xlane.xlu0 %1011
        %1013 = vadd.xlane.f32.xlu0 %v992
        %v1014 = vpop.xlane.xlu0 %1013
        %1015 = vadd.xlane.f32.xlu0 %v993
        %v1016 = vpop.xlane.xlu0 %1015
        %1017 = vadd.xlane.f32.xlu0 %v994
        %v1018 = vpop.xlane.xlu0 %1017
        %1019 = vadd.xlane.f32.xlu0 %v995
        %v1020 = vpop.xlane.xlu0 %1019
        %1021 = vadd.xlane.f32.xlu0 %v996
        %v1022 = vpop.xlane.xlu0 %1021
        %1023 = vadd.xlane.f32.xlu0 %v997
        %v1024 = vpop.xlane.xlu0 %1023
        %1025 = vadd.xlane.f32.xlu0 %v998
        %v1026 = vpop.xlane.xlu0 %1025
        %1027 = vadd.xlane.f32.xlu0 %v999
        %v1028 = vpop.xlane.xlu0 %1027
        %1029 = vadd.xlane.f32.xlu0 %v1000
        %v1030 = vpop.xlane.xlu0 %1029
        %1031 = vadd.xlane.f32.xlu0 %v1001
        %v1032 = vpop.xlane.xlu0 %1031
        %1033 = vadd.xlane.f32.xlu0 %v1002
        %v1034 = vpop.xlane.xlu0 %1033
        %v1035 = vmul.f32 %v1004, %v954
        %v1036 = vmul.f32 %v1006, %v954
        %v1037 = vmul.f32 %v1008, %v954
        %v1038 = vmul.f32 %v1010, %v954
        %v1039 = vmul.f32 %v1012, %v954
        %v1040 = vmul.f32 %v1014, %v954
        %v1041 = vmul.f32 %v1016, %v954
        %v1042 = vmul.f32 %v1018, %v954
        %v1043 = vmul.f32 %v1020, %v954
        %v1044 = vmul.f32 %v1022, %v954
        %v1045 = vmul.f32 %v1024, %v954
        %v1046 = vmul.f32 %v1026, %v954
        %v1047 = vmul.f32 %v1028, %v954
        %v1048 = vmul.f32 %v1030, %v954
        %v1049 = vmul.f32 %v1032, %v954
        %v1050 = vmul.f32 %v1034, %v954
        %v1051 = vadd.f32 %v1035, 1e-05
        %v1052 = vadd.f32 %v1036, 1e-05
        %v1053 = vadd.f32 %v1037, 1e-05
        %v1054 = vadd.f32 %v1038, 1e-05
        %v1055 = vadd.f32 %v1039, 1e-05
        %v1056 = vadd.f32 %v1040, 1e-05
        %v1057 = vadd.f32 %v1041, 1e-05
        %v1058 = vadd.f32 %v1042, 1e-05
        %v1059 = vadd.f32 %v1043, 1e-05
        %v1060 = vadd.f32 %v1044, 1e-05
        %v1061 = vadd.f32 %v1045, 1e-05
        %v1062 = vadd.f32 %v1046, 1e-05
        %v1063 = vadd.f32 %v1047, 1e-05
        %v1064 = vadd.f32 %v1048, 1e-05
        %v1065 = vadd.f32 %v1049, 1e-05
        %v1066 = vadd.f32 %v1050, 1e-05
        %v1067 = vrsqrt.pop %v1051
        %v1068 = vrsqrt.pop %v1052
        %v1069 = vrsqrt.pop %v1053
        %v1070 = vrsqrt.pop %v1054
        %v1071 = vrsqrt.pop %v1055
        %v1072 = vrsqrt.pop %v1056
        %v1073 = vrsqrt.pop %v1057
        %v1074 = vrsqrt.pop %v1058
        %v1075 = vrsqrt.pop %v1059
        %v1076 = vrsqrt.pop %v1060
        %v1077 = vrsqrt.pop %v1061
        %v1078 = vrsqrt.pop %v1062
        %v1079 = vrsqrt.pop %v1063
        %v1080 = vrsqrt.pop %v1064
        %v1081 = vrsqrt.pop %v1065
        %v1082 = vrsqrt.pop %v1066
        %v1083 = vmul.f32 %v971, %v1067
        %v1084 = vmul.f32 %v972, %v1068
        %v1085 = vmul.f32 %v973, %v1069
        %v1086 = vmul.f32 %v974, %v1070
        %v1087 = vmul.f32 %v975, %v1071
        %v1088 = vmul.f32 %v976, %v1072
        %v1089 = vmul.f32 %v977, %v1073
        %v1090 = vmul.f32 %v978, %v1074
        %v1091 = vmul.f32 %v979, %v1075
        %v1092 = vmul.f32 %v980, %v1076
        %v1093 = vmul.f32 %v981, %v1077
        %v1094 = vmul.f32 %v982, %v1078
        %v1095 = vmul.f32 %v983, %v1079
        %v1096 = vmul.f32 %v984, %v1080
        %v1097 = vmul.f32 %v985, %v1081
        %v1098 = vmul.f32 %v986, %v1082
        %v1099 = vld [vmem:[%s5] sm:$0x1]
        %v1101 = vlaneseq
        %v1102 = vshrl.u32 %v1101, 7
        %v1103 = vsub.s32 0, %v1102
        %v1104 = vrot.slane %v1099, %v1103
        %v1106 = vmul.f32 %v1083, %v1104
        %v1107 = vmul.f32 %v1084, %v1104
        %v1108 = vmul.f32 %v1085, %v1104
        %v1109 = vmul.f32 %v1086, %v1104
        %v1110 = vmul.f32 %v1087, %v1104
        %v1111 = vmul.f32 %v1088, %v1104
        %v1112 = vmul.f32 %v1089, %v1104
        %v1113 = vmul.f32 %v1090, %v1104
        %v1114 = vmul.f32 %v1091, %v1104
        %v1115 = vmul.f32 %v1092, %v1104
        %v1116 = vmul.f32 %v1093, %v1104
        %v1117 = vmul.f32 %v1094, %v1104
        %v1118 = vmul.f32 %v1095, %v1104
        %v1119 = vmul.f32 %v1096, %v1104
        %v1120 = vmul.f32 %v1097, %v1104
        %v1121 = vmul.f32 %v1098, %v1104
        %v1122 = vld [vmem:[%s6] sm:$0x1]
        %v1124 = vlaneseq
        %v1125 = vshrl.u32 %v1124, 7
        %v1126 = vsub.s32 0, %v1125
        %v1127 = vrot.slane %v1122, %v1126
        %v1129 = vadd.f32 %v1106, %v1127
        %v1130 = vadd.f32 %v1107, %v1127
        %v1131 = vadd.f32 %v1108, %v1127
        %v1132 = vadd.f32 %v1109, %v1127
        %v1133 = vadd.f32 %v1110, %v1127
        %v1134 = vadd.f32 %v1111, %v1127
        %v1135 = vadd.f32 %v1112, %v1127
        %v1136 = vadd.f32 %v1113, %v1127
        %v1137 = vadd.f32 %v1114, %v1127
        %v1138 = vadd.f32 %v1115, %v1127
        %v1139 = vadd.f32 %v1116, %v1127
        %v1140 = vadd.f32 %v1117, %v1127
        %v1141 = vadd.f32 %v1118, %v1127
        %v1142 = vadd.f32 %v1119, %v1127
        %v1143 = vadd.f32 %v1120, %v1127
        %v1144 = vadd.f32 %v1121, %v1127
        %v1145 = vld [vmem:[%s7] sm:$0xff]
        %v1146 = vld [vmem:[%s7 + $0x8] sm:$0xff]
        %v1147 = vld [vmem:[%s7 + $0x10] sm:$0xff]
        %v1148 = vld [vmem:[%s7 + $0x18] sm:$0xff]
        %v1149 = vld [vmem:[%s7 + $0x20] sm:$0xff]
        %v1150 = vld [vmem:[%s7 + $0x28] sm:$0xff]
        %v1151 = vld [vmem:[%s7 + $0x30] sm:$0xff]
        %v1152 = vld [vmem:[%s7 + $0x38] sm:$0xff]
        %v1153 = vld [vmem:[%s7 + $0x40] sm:$0xff]
        %v1154 = vld [vmem:[%s7 + $0x48] sm:$0xff]
        %v1155 = vld [vmem:[%s7 + $0x50] sm:$0xff]
        %v1156 = vld [vmem:[%s7 + $0x58] sm:$0xff]
        %v1157 = vld [vmem:[%s7 + $0x60] sm:$0xff]
        %v1158 = vld [vmem:[%s7 + $0x68] sm:$0xff]
        %v1159 = vld [vmem:[%s7 + $0x70] sm:$0xff]
        %v1160 = vld [vmem:[%s7 + $0x78] sm:$0xff]
        %v1161 = vld [vmem:[%s8] sm:$0x1]
        %v1163 = vlaneseq
        %v1164 = vshrl.u32 %v1163, 7
        %v1165 = vsub.s32 0, %v1164
        %v1166 = vrot.slane %v1161, %v1165
        %1168 = vmatprep.subr.mxu0 0.0
        %1169 = vmatpush1.msra.mxu0 %v1160
        %1170 = vmatprep.subr.mxu0 0.0
        %1171 = vmatpush1.msra.mxu0 %v1159
        %1172 = vmatprep.subr.mxu0 0.0
        %1173 = vmatpush1.msra.mxu0 %v1158
        %1174 = vmatprep.subr.mxu0 0.0
        %1175 = vmatpush1.msra.mxu0 %v1157
        %1176 = vmatprep.subr.mxu0 0.0
        %1177 = vmatpush1.msra.mxu0 %v1156
        %1178 = vmatprep.subr.mxu0 0.0
        %1179 = vmatpush1.msra.mxu0 %v1155
        %1180 = vmatprep.subr.mxu0 0.0
        %1181 = vmatpush1.msra.mxu0 %v1154
        %1182 = vmatprep.subr.mxu0 0.0
        %1183 = vmatpush1.msra.mxu0 %v1153
        %1184 = vmatprep.subr.mxu0 0.0
        %1185 = vmatpush1.msra.mxu0 %v1152
        %1186 = vmatprep.subr.mxu0 0.0
        %1187 = vmatpush1.msra.mxu0 %v1151
        %1188 = vmatprep.subr.mxu0 0.0
        %1189 = vmatpush1.msra.mxu0 %v1150
        %1190 = vmatprep.subr.mxu0 0.0
        %1191 = vmatpush1.msra.mxu0 %v1149
        %1192 = vmatprep.subr.mxu0 0.0
        %1193 = vmatpush1.msra.mxu0 %v1148
        %1194 = vmatprep.subr.mxu0 0.0
        %1195 = vmatpush1.msra.mxu0 %v1147
        %1196 = vmatprep.subr.mxu0 0.0
        %1197 = vmatpush1.msra.mxu0 %v1146
        %1198 = vmatprep.subr.mxu0 0.0
        %1199 = vmatpush1.msra.mxu0 %v1145
        %1200 = vmatprep.subr.mxu0 0.0
        %1201 = vmatpush2.msra.mxu0 0.0
        %1202 = vmatprep.subr.mxu0 0.0
        %1203 = vmatpush2.msra.mxu0 0.0
        %1204 = vmatprep.subr.mxu0 0.0
        %1205 = vmatpush2.msra.mxu0 0.0
        %1206 = vmatprep.subr.mxu0 0.0
        %1207 = vmatpush2.msra.mxu0 0.0
        %1208 = vmatprep.subr.mxu0 0.0
        %1209 = vmatpush2.msra.mxu0 0.0
        %1210 = vmatprep.subr.mxu0 0.0
        %1211 = vmatpush2.msra.mxu0 0.0
        %1212 = vmatprep.subr.mxu0 0.0
        %1213 = vmatpush2.msra.mxu0 0.0
        %1214 = vmatprep.subr.mxu0 0.0
        %1215 = vmatpush2.msra.mxu0 0.0
        %1216 = vmatprep.subr.mxu0 0.0
        %1217 = vmatpush2.msra.mxu0 0.0
        %1218 = vmatprep.subr.mxu0 0.0
        %1219 = vmatpush2.msra.mxu0 0.0
        %1220 = vmatprep.subr.mxu0 0.0
        %1221 = vmatpush2.msra.mxu0 0.0
        %1222 = vmatprep.subr.mxu0 0.0
        %1223 = vmatpush2.msra.mxu0 0.0
        %1224 = vmatprep.subr.mxu0 0.0
        %1225 = vmatpush2.msra.mxu0 0.0
        %1226 = vmatprep.subr.mxu0 0.0
        %1227 = vmatpush2.msra.mxu0 0.0
        %1228 = vmatprep.subr.mxu0 0.0
        %1229 = vmatpush2.msra.mxu0 0.0
        %1230 = vmatprep.subr.mxu0 0.0
        %1231 = vmatpush2.msra.mxu0 0.0
        %1232 = vmatprep.mubr.f32.mxu0 0.0
        %1233 = vmatmul.mubr.f32.gmra.mxu0 %v1129
        %v1234 = vpop.f32.mrf.mxu0
        %v1235 = vadd.f32 %v1166, %v1234
        %v1236 = vpop.f32.mrf.mxu0
        %1237 = vmatprep.mubr.f32.mxu0 0.0
        %1238 = vmatmul.mubr.f32.gmra.mxu0 %v1130
        %v1239 = vpop.f32.mrf.mxu0
        %v1240 = vadd.f32 %v1166, %v1239
        %v1241 = vpop.f32.mrf.mxu0
        %1242 = vmatprep.mubr.f32.mxu0 0.0
        %1243 = vmatmul.mubr.f32.gmra.mxu0 %v1131
        %v1244 = vpop.f32.mrf.mxu0
        %v1245 = vadd.f32 %v1166, %v1244
        %v1246 = vpop.f32.mrf.mxu0
        %1247 = vmatprep.mubr.f32.mxu0 0.0
        %1248 = vmatmul.mubr.f32.gmra.mxu0 %v1132
        %v1249 = vpop.f32.mrf.mxu0
        %v1250 = vadd.f32 %v1166, %v1249
        %v1251 = vpop.f32.mrf.mxu0
        %1252 = vmatprep.mubr.f32.mxu0 0.0
        %1253 = vmatmul.mubr.f32.gmra.mxu0 %v1133
        %v1254 = vpop.f32.mrf.mxu0
        %v1255 = vadd.f32 %v1166, %v1254
        %v1256 = vpop.f32.mrf.mxu0
        %1257 = vmatprep.mubr.f32.mxu0 0.0
        %1258 = vmatmul.mubr.f32.gmra.mxu0 %v1134
        %v1259 = vpop.f32.mrf.mxu0
        %v1260 = vadd.f32 %v1166, %v1259
        %v1261 = vpop.f32.mrf.mxu0
        %1262 = vmatprep.mubr.f32.mxu0 0.0
        %1263 = vmatmul.mubr.f32.gmra.mxu0 %v1135
        %v1264 = vpop.f32.mrf.mxu0
        %v1265 = vadd.f32 %v1166, %v1264
        %v1266 = vpop.f32.mrf.mxu0
        %1267 = vmatprep.mubr.f32.mxu0 0.0
        %1268 = vmatmul.mubr.f32.gmra.mxu0 %v1136
        %v1269 = vpop.f32.mrf.mxu0
        %v1270 = vadd.f32 %v1166, %v1269
        %v1271 = vpop.f32.mrf.mxu0
        %1272 = vmatprep.mubr.f32.mxu0 0.0
        %1273 = vmatmul.mubr.f32.gmra.mxu0 %v1137
        %v1274 = vpop.f32.mrf.mxu0
        %v1275 = vadd.f32 %v1166, %v1274
        %v1276 = vpop.f32.mrf.mxu0
        %1277 = vmatprep.mubr.f32.mxu0 0.0
        %1278 = vmatmul.mubr.f32.gmra.mxu0 %v1138
        %v1279 = vpop.f32.mrf.mxu0
        %v1280 = vadd.f32 %v1166, %v1279
        %v1281 = vpop.f32.mrf.mxu0
        %1282 = vmatprep.mubr.f32.mxu0 0.0
        %1283 = vmatmul.mubr.f32.gmra.mxu0 %v1139
        %v1284 = vpop.f32.mrf.mxu0
        %v1285 = vadd.f32 %v1166, %v1284
        %v1286 = vpop.f32.mrf.mxu0
        %1287 = vmatprep.mubr.f32.mxu0 0.0
        %1288 = vmatmul.mubr.f32.gmra.mxu0 %v1140
        %v1289 = vpop.f32.mrf.mxu0
        %v1290 = vadd.f32 %v1166, %v1289
        %v1291 = vpop.f32.mrf.mxu0
        %1292 = vmatprep.mubr.f32.mxu0 0.0
        %1293 = vmatmul.mubr.f32.gmra.mxu0 %v1141
        %v1294 = vpop.f32.mrf.mxu0
        %v1295 = vadd.f32 %v1166, %v1294
        %v1296 = vpop.f32.mrf.mxu0
        %1297 = vmatprep.mubr.f32.mxu0 0.0
        %1298 = vmatmul.mubr.f32.gmra.mxu0 %v1142
        %v1299 = vpop.f32.mrf.mxu0
        %v1300 = vadd.f32 %v1166, %v1299
        %v1301 = vpop.f32.mrf.mxu0
        %1302 = vmatprep.mubr.f32.mxu0 0.0
        %1303 = vmatmul.mubr.f32.gmra.mxu0 %v1143
        %v1304 = vpop.f32.mrf.mxu0
        %v1305 = vadd.f32 %v1166, %v1304
        %v1306 = vpop.f32.mrf.mxu0
        %1307 = vmatprep.mubr.f32.mxu0 0.0
        %1308 = vmatmul.mubr.f32.gmra.mxu0 %v1144
        %v1309 = vpop.f32.mrf.mxu0
        %v1310 = vadd.f32 %v1166, %v1309
        %v1311 = vpop.f32.mrf.mxu0
        %1312 = vdwg.mxu0
        %v1313 = vmul.f32 %v1235, %v1235
        %v1314 = vmul.f32 %v1240, %v1240
        %v1315 = vmul.f32 %v1245, %v1245
        %v1316 = vmul.f32 %v1250, %v1250
        %v1317 = vmul.f32 %v1255, %v1255
        %v1318 = vmul.f32 %v1260, %v1260
        %v1319 = vmul.f32 %v1265, %v1265
        %v1320 = vmul.f32 %v1270, %v1270
        %v1321 = vmul.f32 %v1275, %v1275
        %v1322 = vmul.f32 %v1280, %v1280
        %v1323 = vmul.f32 %v1285, %v1285
        %v1324 = vmul.f32 %v1290, %v1290
        %v1325 = vmul.f32 %v1295, %v1295
        %v1326 = vmul.f32 %v1300, %v1300
        %v1327 = vmul.f32 %v1305, %v1305
        %v1328 = vmul.f32 %v1310, %v1310
        %v1329 = vmul.f32 %v1235, %v1313
        %v1330 = vmul.f32 %v1240, %v1314
        %v1331 = vmul.f32 %v1245, %v1315
        %v1332 = vmul.f32 %v1250, %v1316
        %v1333 = vmul.f32 %v1255, %v1317
        %v1334 = vmul.f32 %v1260, %v1318
        %v1335 = vmul.f32 %v1265, %v1319
        %v1336 = vmul.f32 %v1270, %v1320
        %v1337 = vmul.f32 %v1275, %v1321
        %v1338 = vmul.f32 %v1280, %v1322
        %v1339 = vmul.f32 %v1285, %v1323
        %v1340 = vmul.f32 %v1290, %v1324
        %v1341 = vmul.f32 %v1295, %v1325
        %v1342 = vmul.f32 %v1300, %v1326
        %v1343 = vmul.f32 %v1305, %v1327
        %v1344 = vmul.f32 %v1310, %v1328
        %v1345 = vmul.f32 %v1329, 0.044715
        %v1346 = vmul.f32 %v1330, 0.044715
        %v1347 = vmul.f32 %v1331, 0.044715
        %v1348 = vmul.f32 %v1332, 0.044715
        %v1349 = vmul.f32 %v1333, 0.044715
        %v1350 = vmul.f32 %v1334, 0.044715
        %v1351 = vmul.f32 %v1335, 0.044715
        %v1352 = vmul.f32 %v1336, 0.044715
        %v1353 = vmul.f32 %v1337, 0.044715
        %v1354 = vmul.f32 %v1338, 0.044715
        %v1355 = vmul.f32 %v1339, 0.044715
        %v1356 = vmul.f32 %v1340, 0.044715
        %v1357 = vmul.f32 %v1341, 0.044715
        %v1358 = vmul.f32 %v1342, 0.044715
        %v1359 = vmul.f32 %v1343, 0.044715
        %v1360 = vmul.f32 %v1344, 0.044715
        %v1361 = vadd.f32 %v1235, %v1345
        %v1362 = vadd.f32 %v1240, %v1346
        %v1363 = vadd.f32 %v1245, %v1347
        %v1364 = vadd.f32 %v1250, %v1348
        %v1365 = vadd.f32 %v1255, %v1349
        %v1366 = vadd.f32 %v1260, %v1350
        %v1367 = vadd.f32 %v1265, %v1351
        %v1368 = vadd.f32 %v1270, %v1352
        %v1369 = vadd.f32 %v1275, %v1353
        %v1370 = vadd.f32 %v1280, %v1354
        %v1371 = vadd.f32 %v1285, %v1355
        %v1372 = vadd.f32 %v1290, %v1356
        %v1373 = vadd.f32 %v1295, %v1357
        %v1374 = vadd.f32 %v1300, %v1358
        %v1375 = vadd.f32 %v1305, %v1359
        %v1376 = vadd.f32 %v1310, %v1360
        %v1377 = vmul.f32 %v1361, 0.7978846
        %v1378 = vmul.f32 %v1362, 0.7978846
        %v1379 = vmul.f32 %v1363, 0.7978846
        %v1380 = vmul.f32 %v1364, 0.7978846
        %v1381 = vmul.f32 %v1365, 0.7978846
        %v1382 = vmul.f32 %v1366, 0.7978846
        %v1383 = vmul.f32 %v1367, 0.7978846
        %v1384 = vmul.f32 %v1368, 0.7978846
        %v1385 = vmul.f32 %v1369, 0.7978846
        %v1386 = vmul.f32 %v1370, 0.7978846
        %v1387 = vmul.f32 %v1371, 0.7978846
        %v1388 = vmul.f32 %v1372, 0.7978846
        %v1389 = vmul.f32 %v1373, 0.7978846
        %v1390 = vmul.f32 %v1374, 0.7978846
        %v1391 = vmul.f32 %v1375, 0.7978846
        %v1392 = vmul.f32 %v1376, 0.7978846
        %v1393 = vtanh.pop %v1377
        %v1394 = vtanh.pop %v1378
        %v1395 = vtanh.pop %v1379
        %v1396 = vtanh.pop %v1380
        %v1397 = vtanh.pop %v1381
        %v1398 = vtanh.pop %v1382
        %v1399 = vtanh.pop %v1383
        %v1400 = vtanh.pop %v1384
        %v1401 = vtanh.pop %v1385
        %v1402 = vtanh.pop %v1386
        %v1403 = vtanh.pop %v1387
        %v1404 = vtanh.pop %v1388
        %v1405 = vtanh.pop %v1389
        %v1406 = vtanh.pop %v1390
        %v1407 = vtanh.pop %v1391
        %v1408 = vtanh.pop %v1392
        %v1409 = vadd.f32 %v1393, 1.0
        %v1410 = vadd.f32 %v1394, 1.0
        %v1411 = vadd.f32 %v1395, 1.0
        %v1412 = vadd.f32 %v1396, 1.0
        %v1413 = vadd.f32 %v1397, 1.0
        %v1414 = vadd.f32 %v1398, 1.0
        %v1415 = vadd.f32 %v1399, 1.0
        %v1416 = vadd.f32 %v1400, 1.0
        %v1417 = vadd.f32 %v1401, 1.0
        %v1418 = vadd.f32 %v1402, 1.0
        %v1419 = vadd.f32 %v1403, 1.0
        %v1420 = vadd.f32 %v1404, 1.0
        %v1421 = vadd.f32 %v1405, 1.0
        %v1422 = vadd.f32 %v1406, 1.0
        %v1423 = vadd.f32 %v1407, 1.0
        %v1424 = vadd.f32 %v1408, 1.0
        %v1425 = vmul.f32 %v1409, 0.5
        %v1426 = vmul.f32 %v1410, 0.5
        %v1427 = vmul.f32 %v1411, 0.5
        %v1428 = vmul.f32 %v1412, 0.5
        %v1429 = vmul.f32 %v1413, 0.5
        %v1430 = vmul.f32 %v1414, 0.5
        %v1431 = vmul.f32 %v1415, 0.5
        %v1432 = vmul.f32 %v1416, 0.5
        %v1433 = vmul.f32 %v1417, 0.5
        %v1434 = vmul.f32 %v1418, 0.5
        %v1435 = vmul.f32 %v1419, 0.5
        %v1436 = vmul.f32 %v1420, 0.5
        %v1437 = vmul.f32 %v1421, 0.5
        %v1438 = vmul.f32 %v1422, 0.5
        %v1439 = vmul.f32 %v1423, 0.5
        %v1440 = vmul.f32 %v1424, 0.5
        %v1441 = vmul.f32 %v1235, %v1425
        %v1442 = vmul.f32 %v1240, %v1426
        %v1443 = vmul.f32 %v1245, %v1427
        %v1444 = vmul.f32 %v1250, %v1428
        %v1445 = vmul.f32 %v1255, %v1429
        %v1446 = vmul.f32 %v1260, %v1430
        %v1447 = vmul.f32 %v1265, %v1431
        %v1448 = vmul.f32 %v1270, %v1432
        %v1449 = vmul.f32 %v1275, %v1433
        %v1450 = vmul.f32 %v1280, %v1434
        %v1451 = vmul.f32 %v1285, %v1435
        %v1452 = vmul.f32 %v1290, %v1436
        %v1453 = vmul.f32 %v1295, %v1437
        %v1454 = vmul.f32 %v1300, %v1438
        %v1455 = vmul.f32 %v1305, %v1439
        %v1456 = vmul.f32 %v1310, %v1440
        %v1457 = vld [vmem:[%s9] sm:$0xff]
        %v1458 = vld [vmem:[%s9 + $0x8] sm:$0xff]
        %v1459 = vld [vmem:[%s9 + $0x10] sm:$0xff]
        %v1460 = vld [vmem:[%s9 + $0x18] sm:$0xff]
        %v1461 = vld [vmem:[%s9 + $0x20] sm:$0xff]
        %v1462 = vld [vmem:[%s9 + $0x28] sm:$0xff]
        %v1463 = vld [vmem:[%s9 + $0x30] sm:$0xff]
        %v1464 = vld [vmem:[%s9 + $0x38] sm:$0xff]
        %v1465 = vld [vmem:[%s10] sm:$0x1]
        %v1467 = vlaneseq
        %v1468 = vshrl.u32 %v1467, 7
        %v1469 = vsub.s32 0, %v1468
        %v1470 = vrot.slane %v1465, %v1469
        %vm1472 = vcmask 523264
        %v1474 = vsel %vm1472, %v1441, 0
        %v1477 = vsel %vm1472, %v1442, 0
        %v1480 = vsel %vm1472, %v1443, 0
        %v1483 = vsel %vm1472, %v1444, 0
        %v1486 = vsel %vm1472, %v1445, 0
        %v1489 = vsel %vm1472, %v1446, 0
        %v1492 = vsel %vm1472, %v1447, 0
        %v1495 = vsel %vm1472, %v1448, 0
        %v1498 = vsel %vm1472, %v1449, 0
        %v1501 = vsel %vm1472, %v1450, 0
        %v1504 = vsel %vm1472, %v1451, 0
        %v1507 = vsel %vm1472, %v1452, 0
        %v1510 = vsel %vm1472, %v1453, 0
        %v1513 = vsel %vm1472, %v1454, 0
        %v1516 = vsel %vm1472, %v1455, 0
        %v1519 = vsel %vm1472, %v1456, 0
        %1521 = vmatprep.subr.mxu0 0.0
        %1522 = vmatpush1.msra.mxu0 0.0
        %1523 = vmatprep.subr.mxu0 0.0
        %1524 = vmatpush1.msra.mxu0 0.0
        %1525 = vmatprep.subr.mxu0 0.0
        %1526 = vmatpush1.msra.mxu0 0.0
        %1527 = vmatprep.subr.mxu0 0.0
        %1528 = vmatpush1.msra.mxu0 0.0
        %1529 = vmatprep.subr.mxu0 0.0
        %1530 = vmatpush1.msra.mxu0 0.0
        %1531 = vmatprep.subr.mxu0 0.0
        %1532 = vmatpush1.msra.mxu0 0.0
        %1533 = vmatprep.subr.mxu0 0.0
        %1534 = vmatpush1.msra.mxu0 0.0
        %1535 = vmatprep.subr.mxu0 0.0
        %1536 = vmatpush1.msra.mxu0 0.0
        %1537 = vmatprep.subr.mxu0 0.0
        %1538 = vmatpush1.msra.mxu0 %v1464
        %1539 = vmatprep.subr.mxu0 0.0
        %1540 = vmatpush1.msra.mxu0 %v1463
        %1541 = vmatprep.subr.mxu0 0.0
        %1542 = vmatpush1.msra.mxu0 %v1462
        %1543 = vmatprep.subr.mxu0 0.0
        %1544 = vmatpush1.msra.mxu0 %v1461
        %1545 = vmatprep.subr.mxu0 0.0
        %1546 = vmatpush1.msra.mxu0 %v1460
        %1547 = vmatprep.subr.mxu0 0.0
        %1548 = vmatpush1.msra.mxu0 %v1459
        %1549 = vmatprep.subr.mxu0 0.0
        %1550 = vmatpush1.msra.mxu0 %v1458
        %1551 = vmatprep.subr.mxu0 0.0
        %1552 = vmatpush1.msra.mxu0 %v1457
        %1553 = vmatprep.subr.mxu0 0.0
        %1554 = vmatpush2.msra.mxu0 0.0
        %1555 = vmatprep.subr.mxu0 0.0
        %1556 = vmatpush2.msra.mxu0 0.0
        %1557 = vmatprep.subr.mxu0 0.0
        %1558 = vmatpush2.msra.mxu0 0.0
        %1559 = vmatprep.subr.mxu0 0.0
        %1560 = vmatpush2.msra.mxu0 0.0
        %1561 = vmatprep.subr.mxu0 0.0
        %1562 = vmatpush2.msra.mxu0 0.0
        %1563 = vmatprep.subr.mxu0 0.0
        %1564 = vmatpush2.msra.mxu0 0.0
        %1565 = vmatprep.subr.mxu0 0.0
        %1566 = vmatpush2.msra.mxu0 0.0
        %1567 = vmatprep.subr.mxu0 0.0
        %1568 = vmatpush2.msra.mxu0 0.0
        %1569 = vmatprep.subr.mxu0 0.0
        %1570 = vmatpush2.msra.mxu0 0.0
        %1571 = vmatprep.subr.mxu0 0.0
        %1572 = vmatpush2.msra.mxu0 0.0
        %1573 = vmatprep.subr.mxu0 0.0
        %1574 = vmatpush2.msra.mxu0 0.0
        %1575 = vmatprep.subr.mxu0 0.0
        %1576 = vmatpush2.msra.mxu0 0.0
        %1577 = vmatprep.subr.mxu0 0.0
        %1578 = vmatpush2.msra.mxu0 0.0
        %1579 = vmatprep.subr.mxu0 0.0
        %1580 = vmatpush2.msra.mxu0 0.0
        %1581 = vmatprep.subr.mxu0 0.0
        %1582 = vmatpush2.msra.mxu0 0.0
        %1583 = vmatprep.subr.mxu0 0.0
        %1584 = vmatpush2.msra.mxu0 0.0
        %1585 = vmatprep.mubr.f32.mxu0 0.0
        %1586 = vmatmul.mubr.f32.gmra.mxu0 %v1474
        %v1587 = vpop.f32.mrf.mxu0
        %v1588 = vadd.f32 %v1470, %v1587
        %v1589 = vpop.f32.mrf.mxu0
        %1590 = vmatprep.mubr.f32.mxu0 0.0
        %1591 = vmatmul.mubr.f32.gmra.mxu0 %v1477
        %v1592 = vpop.f32.mrf.mxu0
        %v1593 = vadd.f32 %v1470, %v1592
        %v1594 = vpop.f32.mrf.mxu0
        %1595 = vmatprep.mubr.f32.mxu0 0.0
        %1596 = vmatmul.mubr.f32.gmra.mxu0 %v1480
        %v1597 = vpop.f32.mrf.mxu0
        %v1598 = vadd.f32 %v1470, %v1597
        %v1599 = vpop.f32.mrf.mxu0
        %1600 = vmatprep.mubr.f32.mxu0 0.0
        %1601 = vmatmul.mubr.f32.gmra.mxu0 %v1483
        %v1602 = vpop.f32.mrf.mxu0
        %v1603 = vadd.f32 %v1470, %v1602
        %v1604 = vpop.f32.mrf.mxu0
        %1605 = vmatprep.mubr.f32.mxu0 0.0
        %1606 = vmatmul.mubr.f32.gmra.mxu0 %v1486
        %v1607 = vpop.f32.mrf.mxu0
        %v1608 = vadd.f32 %v1470, %v1607
        %v1609 = vpop.f32.mrf.mxu0
        %1610 = vmatprep.mubr.f32.mxu0 0.0
        %1611 = vmatmul.mubr.f32.gmra.mxu0 %v1489
        %v1612 = vpop.f32.mrf.mxu0
        %v1613 = vadd.f32 %v1470, %v1612
        %v1614 = vpop.f32.mrf.mxu0
        %1615 = vmatprep.mubr.f32.mxu0 0.0
        %1616 = vmatmul.mubr.f32.gmra.mxu0 %v1492
        %v1617 = vpop.f32.mrf.mxu0
        %v1618 = vadd.f32 %v1470, %v1617
        %v1619 = vpop.f32.mrf.mxu0
        %1620 = vmatprep.mubr.f32.mxu0 0.0
        %1621 = vmatmul.mubr.f32.gmra.mxu0 %v1495
        %v1622 = vpop.f32.mrf.mxu0
        %v1623 = vadd.f32 %v1470, %v1622
        %v1624 = vpop.f32.mrf.mxu0
        %1625 = vmatprep.mubr.f32.mxu0 0.0
        %1626 = vmatmul.mubr.f32.gmra.mxu0 %v1498
        %v1627 = vpop.f32.mrf.mxu0
        %v1628 = vadd.f32 %v1470, %v1627
        %v1629 = vpop.f32.mrf.mxu0
        %1630 = vmatprep.mubr.f32.mxu0 0.0
        %1631 = vmatmul.mubr.f32.gmra.mxu0 %v1501
        %v1632 = vpop.f32.mrf.mxu0
        %v1633 = vadd.f32 %v1470, %v1632
        %v1634 = vpop.f32.mrf.mxu0
        %1635 = vmatprep.mubr.f32.mxu0 0.0
        %1636 = vmatmul.mubr.f32.gmra.mxu0 %v1504
        %v1637 = vpop.f32.mrf.mxu0
        %v1638 = vadd.f32 %v1470, %v1637
        %v1639 = vpop.f32.mrf.mxu0
        %1640 = vmatprep.mubr.f32.mxu0 0.0
        %1641 = vmatmul.mubr.f32.gmra.mxu0 %v1507
        %v1642 = vpop.f32.mrf.mxu0
        %v1643 = vadd.f32 %v1470, %v1642
        %v1644 = vpop.f32.mrf.mxu0
        %1645 = vmatprep.mubr.f32.mxu0 0.0
        %1646 = vmatmul.mubr.f32.gmra.mxu0 %v1510
        %v1647 = vpop.f32.mrf.mxu0
        %v1648 = vadd.f32 %v1470, %v1647
        %v1649 = vpop.f32.mrf.mxu0
        %1650 = vmatprep.mubr.f32.mxu0 0.0
        %1651 = vmatmul.mubr.f32.gmra.mxu0 %v1513
        %v1652 = vpop.f32.mrf.mxu0
        %v1653 = vadd.f32 %v1470, %v1652
        %v1654 = vpop.f32.mrf.mxu0
        %1655 = vmatprep.mubr.f32.mxu0 0.0
        %1656 = vmatmul.mubr.f32.gmra.mxu0 %v1516
        %v1657 = vpop.f32.mrf.mxu0
        %v1658 = vadd.f32 %v1470, %v1657
        %v1659 = vpop.f32.mrf.mxu0
        %1660 = vmatprep.mubr.f32.mxu0 0.0
        %1661 = vmatmul.mubr.f32.gmra.mxu0 %v1519
        %v1662 = vpop.f32.mrf.mxu0
        %v1663 = vadd.f32 %v1470, %v1662
        %v1664 = vpop.f32.mrf.mxu0
        %1665 = vdwg.mxu0
        %vm1666 = vcmask 64512
        %v1667 = vsel %vm1666, %v1588, -inf
        %v1668 = vsel %vm1666, %v1593, -inf
        %v1669 = vsel %vm1666, %v1598, -inf
        %v1670 = vmax.f32 %v1667, %v1669
        %v1671 = vsel %vm1666, %v1603, -inf
        %v1672 = vmax.f32 %v1668, %v1671
        %v1673 = vsel %vm1666, %v1608, -inf
        %v1674 = vmax.f32 %v1670, %v1673
        %v1675 = vsel %vm1666, %v1613, -inf
        %v1676 = vmax.f32 %v1672, %v1675
        %v1677 = vsel %vm1666, %v1618, -inf
        %v1678 = vmax.f32 %v1674, %v1677
        %v1679 = vsel %vm1666, %v1623, -inf
        %v1680 = vmax.f32 %v1676, %v1679
        %v1681 = vmax.f32 %v1678, %v1680
        %v1682 = vrot.slane %v1681, 4
        %v1683 = vmax.f32 %v1681, %v1682
        %v1684 = vrot.slane %v1683, 2
        %v1685 = vmax.f32 %v1683, %v1684
        %v1686 = vrot.slane %v1685, 1
        %v1687 = vmax.f32 %v1685, %v1686
        %v1688 = vsel %vm1666, %v1628, -inf
        %v1689 = vsel %vm1666, %v1633, -inf
        %v1690 = vsel %vm1666, %v1638, -inf
        %v1691 = vmax.f32 %v1688, %v1690
        %v1692 = vsel %vm1666, %v1643, -inf
        %v1693 = vmax.f32 %v1689, %v1692
        %v1694 = vsel %vm1666, %v1648, -inf
        %v1695 = vmax.f32 %v1691, %v1694
        %v1696 = vsel %vm1666, %v1653, -inf
        %v1697 = vmax.f32 %v1693, %v1696
        %v1698 = vsel %vm1666, %v1658, -inf
        %v1699 = vmax.f32 %v1695, %v1698
        %v1700 = vsel %vm1666, %v1663, -inf
        %v1701 = vmax.f32 %v1697, %v1700
        %v1702 = vmax.f32 %v1699, %v1701
        %v1703 = vrot.slane %v1702, 4
        %v1704 = vmax.f32 %v1702, %v1703
        %v1705 = vrot.slane %v1704, 2
        %v1706 = vmax.f32 %v1704, %v1705
        %v1707 = vrot.slane %v1706, 1
        %v1708 = vmax.f32 %v1706, %v1707
        %v1709 = vsub.f32 %v1588, %v1687
        %v1710 = vsub.f32 %v1593, %v1687
        %v1711 = vsub.f32 %v1598, %v1687
        %v1712 = vsub.f32 %v1603, %v1687
        %v1713 = vsub.f32 %v1608, %v1687
        %v1714 = vsub.f32 %v1613, %v1687
        %v1715 = vsub.f32 %v1618, %v1687
        %v1716 = vsub.f32 %v1623, %v1687
        %v1717 = vsub.f32 %v1628, %v1708
        %v1718 = vsub.f32 %v1633, %v1708
        %v1719 = vsub.f32 %v1638, %v1708
        %v1720 = vsub.f32 %v1643, %v1708
        %v1721 = vsub.f32 %v1648, %v1708
        %v1722 = vsub.f32 %v1653, %v1708
        %v1723 = vsub.f32 %v1658, %v1708
        %v1724 = vsub.f32 %v1663, %v1708
        %v1725 = vmul.f32 %v1709, 1.442695
        %v1726 = vpow.pop %v1725
        %v1727 = vmul.f32 %v1710, 1.442695
        %v1728 = vpow.pop %v1727
        %v1729 = vmul.f32 %v1711, 1.442695
        %v1730 = vpow.pop %v1729
        %v1731 = vmul.f32 %v1712, 1.442695
        %v1732 = vpow.pop %v1731
        %v1733 = vmul.f32 %v1713, 1.442695
        %v1734 = vpow.pop %v1733
        %v1735 = vmul.f32 %v1714, 1.442695
        %v1736 = vpow.pop %v1735
        %v1737 = vmul.f32 %v1715, 1.442695
        %v1738 = vpow.pop %v1737
        %v1739 = vmul.f32 %v1716, 1.442695
        %v1740 = vpow.pop %v1739
        %v1741 = vmul.f32 %v1717, 1.442695
        %v1742 = vpow.pop %v1741
        %v1743 = vmul.f32 %v1718, 1.442695
        %v1744 = vpow.pop %v1743
        %v1745 = vmul.f32 %v1719, 1.442695
        %v1746 = vpow.pop %v1745
        %v1747 = vmul.f32 %v1720, 1.442695
        %v1748 = vpow.pop %v1747
        %v1749 = vmul.f32 %v1721, 1.442695
        %v1750 = vpow.pop %v1749
        %v1751 = vmul.f32 %v1722, 1.442695
        %v1752 = vpow.pop %v1751
        %v1753 = vmul.f32 %v1723, 1.442695
        %v1754 = vpow.pop %v1753
        %v1755 = vmul.f32 %v1724, 1.442695
        %v1756 = vpow.pop %v1755
        %v1757 = vsel %vm1666, %v1726, 0.0
        %v1758 = vsel %vm1666, %v1728, 0.0
        %v1759 = vadd.f32 %v1757, %v1758
        %v1760 = vsel %vm1666, %v1730, 0.0
        %v1761 = vadd.f32 %v1759, %v1760
        %v1762 = vsel %vm1666, %v1732, 0.0
        %v1763 = vadd.f32 %v1761, %v1762
        %v1764 = vsel %vm1666, %v1734, 0.0
        %v1765 = vadd.f32 %v1763, %v1764
        %v1766 = vsel %vm1666, %v1736, 0.0
        %v1767 = vadd.f32 %v1765, %v1766
        %v1768 = vsel %vm1666, %v1738, 0.0
        %v1769 = vadd.f32 %v1767, %v1768
        %v1770 = vsel %vm1666, %v1740, 0.0
        %v1771 = vadd.f32 %v1769, %v1770
        %v1772 = vrot.slane %v1771, 4
        %v1773 = vadd.f32 %v1771, %v1772
        %v1774 = vrot.slane %v1773, 2
        %v1775 = vadd.f32 %v1773, %v1774
        %v1776 = vrot.slane %v1775, 1
        %v1777 = vadd.f32 %v1775, %v1776
        %v1778 = vsel %vm1666, %v1742, 0.0
        %v1779 = vsel %vm1666, %v1744, 0.0
        %v1780 = vadd.f32 %v1778, %v1779
        %v1781 = vsel %vm1666, %v1746, 0.0
        %v1782 = vadd.f32 %v1780, %v1781
        %v1783 = vsel %vm1666, %v1748, 0.0
        %v1784 = vadd.f32 %v1782, %v1783
        %v1785 = vsel %vm1666, %v1750, 0.0
        %v1786 = vadd.f32 %v1784, %v1785
        %v1787 = vsel %vm1666, %v1752, 0.0
        %v1788 = vadd.f32 %v1786, %v1787
        %v1789 = vsel %vm1666, %v1754, 0.0
        %v1790 = vadd.f32 %v1788, %v1789
        %v1791 = vsel %vm1666, %v1756, 0.0
        %v1792 = vadd.f32 %v1790, %v1791
        %v1793 = vrot.slane %v1792, 4
        %v1794 = vadd.f32 %v1792, %v1793
        %v1795 = vrot.slane %v1794, 2
        %v1796 = vadd.f32 %v1794, %v1795
        %v1797 = vrot.slane %v1796, 1
        %v1798 = vadd.f32 %v1796, %v1797
        %v1799 = vrcp.pop %v1777
        %v1800 = vrcp.pop %v1798
        %v1801 = vmul.f32 %v1726, %v1799
        %v1802 = vmul.f32 %v1728, %v1799
        %v1803 = vmul.f32 %v1730, %v1799
        %v1804 = vmul.f32 %v1732, %v1799
        %v1805 = vmul.f32 %v1734, %v1799
        %v1806 = vmul.f32 %v1736, %v1799
        %v1807 = vmul.f32 %v1738, %v1799
        %v1808 = vmul.f32 %v1740, %v1799
        %v1809 = vmul.f32 %v1742, %v1800
        %v1810 = vmul.f32 %v1744, %v1800
        %v1811 = vmul.f32 %v1746, %v1800
        %v1812 = vmul.f32 %v1748, %v1800
        %v1813 = vmul.f32 %v1750, %v1800
        %v1814 = vmul.f32 %v1752, %v1800
        %v1815 = vmul.f32 %v1754, %v1800
        %v1816 = vmul.f32 %v1756, %v1800
        %1817 = vxpose.xlu0.b32.start [1/16] %v1801, 128
        %1818 = vxpose.xlu0.b32.cont [2/16] %v1802, 128
        %1819 = vxpose.xlu0.b32.cont [3/16] %v1803, 128
        %1820 = vxpose.xlu0.b32.cont [4/16] %v1804, 128
        %1821 = vxpose.xlu0.b32.cont [5/16] %v1805, 128
        %1822 = vxpose.xlu0.b32.cont [6/16] %v1806, 128
        %1823 = vxpose.xlu0.b32.cont [7/16] %v1807, 128
        %1824 = vxpose.xlu0.b32.cont [8/16] %v1808, 128
        %1825 = vxpose.xlu0.b32.cont [9/16] 0.0, 128
        %1826 = vxpose.xlu0.b32.cont [10/16] 0.0, 128
        %1827 = vxpose.xlu0.b32.cont [11/16] 0.0, 128
        %1828 = vxpose.xlu0.b32.cont [12/16] 0.0, 128
        %1829 = vxpose.xlu0.b32.cont [13/16] 0.0, 128
        %1830 = vxpose.xlu0.b32.cont [14/16] 0.0, 128
        %1831 = vxpose.xlu0.b32.cont [15/16] 0.0, 128
        %1832 = vxpose.xlu0.b32.end [16/16] 0.0, 128
        %v1833 = vpop.trf.xlu0
        %v1834 = vpop.trf.xlu0
        %v1835 = vpop.trf.xlu0
        %v1836 = vpop.trf.xlu0
        %v1837 = vpop.trf.xlu0
        %v1838 = vpop.trf.xlu0
        %v1839 = vpop.trf.xlu0
        %v1840 = vpop.trf.xlu0
        %v1841 = vpop.trf.xlu0
        %v1842 = vpop.trf.xlu0
        %v1843 = vpop.trf.xlu0
        %v1844 = vpop.trf.xlu0
        %v1845 = vpop.trf.xlu0
        %v1846 = vpop.trf.xlu0
        %v1847 = vpop.trf.xlu0
        %v1848 = vpop.trf.xlu0
        %1849 = vxpose.xlu0.b32.start [1/16] %v1809, 128
        %1850 = vxpose.xlu0.b32.cont [2/16] %v1810, 128
        %1851 = vxpose.xlu0.b32.cont [3/16] %v1811, 128
        %1852 = vxpose.xlu0.b32.cont [4/16] %v1812, 128
        %1853 = vxpose.xlu0.b32.cont [5/16] %v1813, 128
        %1854 = vxpose.xlu0.b32.cont [6/16] %v1814, 128
        %1855 = vxpose.xlu0.b32.cont [7/16] %v1815, 128
        %1856 = vxpose.xlu0.b32.cont [8/16] %v1816, 128
        %1857 = vxpose.xlu0.b32.cont [9/16] 0.0, 128
        %1858 = vxpose.xlu0.b32.cont [10/16] 0.0, 128
        %1859 = vxpose.xlu0.b32.cont [11/16] 0.0, 128
        %1860 = vxpose.xlu0.b32.cont [12/16] 0.0, 128
        %1861 = vxpose.xlu0.b32.cont [13/16] 0.0, 128
        %1862 = vxpose.xlu0.b32.cont [14/16] 0.0, 128
        %1863 = vxpose.xlu0.b32.cont [15/16] 0.0, 128
        %1864 = vxpose.xlu0.b32.end [16/16] 0.0, 128
        %v1865 = vpop.trf.xlu0
        %v1866 = vpop.trf.xlu0
        %v1867 = vpop.trf.xlu0
        %v1868 = vpop.trf.xlu0
        %v1869 = vpop.trf.xlu0
        %v1870 = vpop.trf.xlu0
        %v1871 = vpop.trf.xlu0
        %v1872 = vpop.trf.xlu0
        %v1873 = vpop.trf.xlu0
        %v1874 = vpop.trf.xlu0
        %v1875 = vpop.trf.xlu0
        %v1876 = vpop.trf.xlu0
        %v1877 = vpop.trf.xlu0
        %v1878 = vpop.trf.xlu0
        %v1879 = vpop.trf.xlu0
        %v1880 = vpop.trf.xlu0
        %v1882 = vsel %vm1472, %v1833, 0
        %1884 = vmatprep.subr.mxu0 0.0
        %1885 = vmatpush1.msra.mxu0 0.0
        %1886 = vmatprep.subr.mxu0 0.0
        %1887 = vmatpush1.msra.mxu0 0.0
        %1888 = vmatprep.subr.mxu0 0.0
        %1889 = vmatpush1.msra.mxu0 0.0
        %1890 = vmatprep.subr.mxu0 0.0
        %1891 = vmatpush1.msra.mxu0 0.0
        %1892 = vmatprep.subr.mxu0 0.0
        %1893 = vmatpush1.msra.mxu0 0.0
        %1894 = vmatprep.subr.mxu0 0.0
        %1895 = vmatpush1.msra.mxu0 0.0
        %1896 = vmatprep.subr.mxu0 0.0
        %1897 = vmatpush1.msra.mxu0 0.0
        %1898 = vmatprep.subr.mxu0 0.0
        %1899 = vmatpush1.msra.mxu0 0.0
        %1900 = vmatprep.subr.mxu0 0.0
        %1901 = vmatpush1.msra.mxu0 %v913
        %1902 = vmatprep.subr.mxu0 0.0
        %1903 = vmatpush1.msra.mxu0 %v912
        %1904 = vmatprep.subr.mxu0 0.0
        %1905 = vmatpush1.msra.mxu0 %v911
        %1906 = vmatprep.subr.mxu0 0.0
        %1907 = vmatpush1.msra.mxu0 %v910
        %1908 = vmatprep.subr.mxu0 0.0
        %1909 = vmatpush1.msra.mxu0 %v909
        %1910 = vmatprep.subr.mxu0 0.0
        %1911 = vmatpush1.msra.mxu0 %v908
        %1912 = vmatprep.subr.mxu0 0.0
        %1913 = vmatpush1.msra.mxu0 %v907
        %1914 = vmatprep.subr.mxu0 0.0
        %1915 = vmatpush1.msra.mxu0 %v906
        %1916 = vmatprep.subr.mxu0 0.0
        %1917 = vmatpush2.msra.mxu0 0.0
        %1918 = vmatprep.subr.mxu0 0.0
        %1919 = vmatpush2.msra.mxu0 0.0
        %1920 = vmatprep.subr.mxu0 0.0
        %1921 = vmatpush2.msra.mxu0 0.0
        %1922 = vmatprep.subr.mxu0 0.0
        %1923 = vmatpush2.msra.mxu0 0.0
        %1924 = vmatprep.subr.mxu0 0.0
        %1925 = vmatpush2.msra.mxu0 0.0
        %1926 = vmatprep.subr.mxu0 0.0
        %1927 = vmatpush2.msra.mxu0 0.0
        %1928 = vmatprep.subr.mxu0 0.0
        %1929 = vmatpush2.msra.mxu0 0.0
        %1930 = vmatprep.subr.mxu0 0.0
        %1931 = vmatpush2.msra.mxu0 0.0
        %1932 = vmatprep.subr.mxu0 0.0
        %1933 = vmatpush2.msra.mxu0 0.0
        %1934 = vmatprep.subr.mxu0 0.0
        %1935 = vmatpush2.msra.mxu0 0.0
        %1936 = vmatprep.subr.mxu0 0.0
        %1937 = vmatpush2.msra.mxu0 0.0
        %1938 = vmatprep.subr.mxu0 0.0
        %1939 = vmatpush2.msra.mxu0 0.0
        %1940 = vmatprep.subr.mxu0 0.0
        %1941 = vmatpush2.msra.mxu0 0.0
        %1942 = vmatprep.subr.mxu0 0.0
        %1943 = vmatpush2.msra.mxu0 0.0
        %1944 = vmatprep.subr.mxu0 0.0
        %1945 = vmatpush2.msra.mxu0 0.0
        %1946 = vmatprep.subr.mxu0 0.0
        %1947 = vmatpush2.msra.mxu0 0.0
        %1948 = vmatprep.mubr.f32.mxu0 0.0
        %1949 = vmatmul.mubr.f32.gmra.mxu0 %v1882
        %v1950 = vpop.f32.mrf.mxu0
        %v1951 = vadd.f32 0.0, %v1950
        %v1952 = vpop.f32.mrf.mxu0
        %1953 = vdwg.mxu0
        %v1955 = vsel %vm1472, %v1865, 0
        %1957 = vmatprep.subr.mxu0 0.0
        %1958 = vmatpush1.msra.mxu0 0.0
        %1959 = vmatprep.subr.mxu0 0.0
        %1960 = vmatpush1.msra.mxu0 0.0
        %1961 = vmatprep.subr.mxu0 0.0
        %1962 = vmatpush1.msra.mxu0 0.0
        %1963 = vmatprep.subr.mxu0 0.0
        %1964 = vmatpush1.msra.mxu0 0.0
        %1965 = vmatprep.subr.mxu0 0.0
        %1966 = vmatpush1.msra.mxu0 0.0
        %1967 = vmatprep.subr.mxu0 0.0
        %1968 = vmatpush1.msra.mxu0 0.0
        %1969 = vmatprep.subr.mxu0 0.0
        %1970 = vmatpush1.msra.mxu0 0.0
        %1971 = vmatprep.subr.mxu0 0.0
        %1972 = vmatpush1.msra.mxu0 0.0
        %1973 = vmatprep.subr.mxu0 0.0
        %1974 = vmatpush1.msra.mxu0 %v921
        %1975 = vmatprep.subr.mxu0 0.0
        %1976 = vmatpush1.msra.mxu0 %v920
        %1977 = vmatprep.subr.mxu0 0.0
        %1978 = vmatpush1.msra.mxu0 %v919
        %1979 = vmatprep.subr.mxu0 0.0
        %1980 = vmatpush1.msra.mxu0 %v918
        %1981 = vmatprep.subr.mxu0 0.0
        %1982 = vmatpush1.msra.mxu0 %v917
        %1983 = vmatprep.subr.mxu0 0.0
        %1984 = vmatpush1.msra.mxu0 %v916
        %1985 = vmatprep.subr.mxu0 0.0
        %1986 = vmatpush1.msra.mxu0 %v915
        %1987 = vmatprep.subr.mxu0 0.0
        %1988 = vmatpush1.msra.mxu0 %v914
        %1989 = vmatprep.subr.mxu0 0.0
        %1990 = vmatpush2.msra.mxu0 0.0
        %1991 = vmatprep.subr.mxu0 0.0
        %1992 = vmatpush2.msra.mxu0 0.0
        %1993 = vmatprep.subr.mxu0 0.0
        %1994 = vmatpush2.msra.mxu0 0.0
        %1995 = vmatprep.subr.mxu0 0.0
        %1996 = vmatpush2.msra.mxu0 0.0
        %1997 = vmatprep.subr.mxu0 0.0
        %1998 = vmatpush2.msra.mxu0 0.0
        %1999 = vmatprep.subr.mxu0 0.0
        %2000 = vmatpush2.msra.mxu0 0.0
        %2001 = vmatprep.subr.mxu0 0.0
        %2002 = vmatpush2.msra.mxu0 0.0
        %2003 = vmatprep.subr.mxu0 0.0
        %2004 = vmatpush2.msra.mxu0 0.0
        %2005 = vmatprep.subr.mxu0 0.0
        %2006 = vmatpush2.msra.mxu0 0.0
        %2007 = vmatprep.subr.mxu0 0.0
        %2008 = vmatpush2.msra.mxu0 0.0
        %2009 = vmatprep.subr.mxu0 0.0
        %2010 = vmatpush2.msra.mxu0 0.0
        %2011 = vmatprep.subr.mxu0 0.0
        %2012 = vmatpush2.msra.mxu0 0.0
        %2013 = vmatprep.subr.mxu0 0.0
        %2014 = vmatpush2.msra.mxu0 0.0
        %2015 = vmatprep.subr.mxu0 0.0
        %2016 = vmatpush2.msra.mxu0 0.0
        %2017 = vmatprep.subr.mxu0 0.0
        %2018 = vmatpush2.msra.mxu0 0.0
        %2019 = vmatprep.subr.mxu0 0.0
        %2020 = vmatpush2.msra.mxu0 0.0
        %2021 = vmatprep.mubr.f32.mxu0 0.0
        %2022 = vmatmul.mubr.f32.gmra.mxu0 %v1955
        %v2023 = vpop.f32.mrf.mxu0
        %v2024 = vadd.f32 0.0, %v2023
        %v2025 = vpop.f32.mrf.mxu0
        %2026 = vdwg.mxu0
        %2027 = vst [vmem:[%s410] sm:$0xff] %v1951
        %2028 = vst [vmem:[%s410 + $0x8] sm:$0xff] %v2024
        %s2029 = sand.u32 %s279, 1
        %s2030 = scalar_lea.sflag [#allocation3], %s2029
        %s2031 = sand.u32 %s279, 1
        %s2032 = smul.addr %s2031, 16
        %s2033 = scalar_lea.vmem [#allocation2], %s2032
        // Predicated region
        $region65: #{tpu_custom_call.1} parent=63 // pred_check
          %p2034 = pneg %p289
        $region66: #{tpu_custom_call.1} parent=63 // pred_check_branch
          %2036 = sbr.rel (%p2034) target = $region68
        $region67: #{tpu_custom_call.1} parent=63 // pred_region
          %s2037 = smul.u32 2, %s25
          %s2039 = ssub.s32 256, 256
          %2040 = vsyncadd %s2030, %s2039
          %s2041 = smul.addr %s2037, 128
          %s2042 = scalar_lea.hbm %s11, %s2041
          %s2043 = sshll.u32 %s2033, 4
          %s2044 = int_to_ptr.vmem [resolvable:$true] %s2043
          %2049 = dma.vmem_to_hbm [thread:$0]  %s2044, 256, %s2042, %s2030, 128, 128, 8
        $region68: #{tpu_custom_call.1} parent=63 // pred_fallthru
          _
      $region64: #{tpu_custom_call.1} parent=5 // pred_fallthru
        _
      %p2050 = scmp.le.s32.totalorder 2, %s20
      // Predicated region
      $region69: #{tpu_custom_call.1} parent=5 // pred_check
        %p2051 = pneg %p2050
      $region70: #{tpu_custom_call.1} parent=5 // pred_check_branch
        %2053 = sbr.rel (%p2051) target = $region72
      $region71: #{tpu_custom_call.1} parent=5 // pred_region
        %s2054 = ssub.s32 %s20, 2
        // Predicated region
        $region73: #{tpu_custom_call.1} parent=71 // pred_check
          %p2055 = pneg %p295
        $region74: #{tpu_custom_call.1} parent=71 // pred_check_branch
          %2057 = sbr.rel (%p2055) target = $region76
        $region75: #{tpu_custom_call.1} parent=71 // pred_region
          %s2058 = sand.u32 %s280, 1
          %s2059 = scalar_lea.sflag [#allocation3], %s2058
          %s2060 = sand.u32 %s280, 1
          %s2061 = smul.addr %s2060, 16
          %s2062 = scalar_lea.vmem [#allocation2], %s2061
          %2063 = dma.done %s2059, 256
        $region76: #{tpu_custom_call.1} parent=71 // pred_fallthru
          _
      $region72: #{tpu_custom_call.1} parent=5 // pred_fallthru
        _
    $region6: #{tpu_custom_call.1} parent=1 // loop_footer
      %s24 = sadd.s32 1, %s20
    $region7: #{tpu_custom_call.1} parent=1 // loop_footer_branch
      %19 = sbr.rel target = $region3
    $region8: #{tpu_custom_call.1} parent=1 // loop_exit
      _
    %2064 = vsyncpa [#allocation3], 1
    %s2065 = scalar_lea.sflag [#allocation3], 1
    %2066 = vsyncpa %s2065, 1

</llo_original>
